<compile_context>
chip_gen: v7x
topology: tpu7x:2x2x1
jax: 0.10.0
libtpu: 0.0.40
codegen_flags: <defaults>
</compile_context>

<pallas_src>
import functools

import jax
import jax.numpy as jnp
import numpy as np
from jax.experimental import pallas as pl
from jax.experimental.pallas import tpu as pltpu


def _round_up(x, m):
    return ((x + m - 1) // m) * m


# Only bother single-buffering the resident image block when a buffer is big
# enough for the saved copy to matter for VMEM fit.
_SINGLE_BUFFER_X_BYTES = 4 * 1024 * 1024


def _vmem_limit_bytes():
    """~3/4 of physical VMEM, capped at 96 MiB (96 MiB on v5e/v6e, 48 MiB v7x)."""
    try:
        cap = pltpu.get_tpu_info().vmem_capacity_bytes
    except Exception:
        cap = 64 * 1024 * 1024
    return min(96 * 1024 * 1024, (cap * 3) // 4)


# ----------------------------------------------------------------------------
# Fused conv3x3(+bias) + PReLU kernel (pixel shuffle handled as wrapper layout)
# ----------------------------------------------------------------------------
def _make_kernel(tm, tco, wp2, compute_dtype):
    def kernel(x_ref, w_ref, b_ref, a_ref, o_ref):
        # x_ref: (1, M_in, Cin)   flattened zero-padded NHWC image (f32, VMEM)
        # w_ref: (9, Cin, TCO)    per-tap weight matrices (bf16/f32)
        # b_ref: (1, TCO)         bias (f32)
        # a_ref: (1,)             PReLU alpha (f32, SMEM scalar)
        # o_ref: (1, TM, TCO)     lane-dense output tile (bf16)
        base = pl.multiple_of(pl.program_id(2) * tm, tm)

        # Two partial accumulators so consecutive small-K MXU drains overlap
        # on v5e/v6e (MRF result FIFO); summed once at the end.
        accs = [jnp.zeros((tm, tco), jnp.float32),
                jnp.zeros((tm, tco), jnp.float32)]
        t = 0
        # 3x3 conv == sum over 9 taps of a row-shifted GEMM on the flattened
        # padded image; tap (dy, dx) is a row offset dy*(W+2)+dx.  Load and
        # cast each dy band once, derive the three dx taps by static slices.
        for dy in range(3):
            band = x_ref[0, pl.ds(base + dy * wp2, tm + 8), :].astype(compute_dtype)
            for dx in range(3):
                xs = band[dx:dx + tm, :]
                accs[t] = accs[t] + jnp.dot(
                    xs, w_ref[dy * 3 + dx], preferred_element_type=jnp.float32)
                t ^= 1

        acc = accs[0] + accs[1] + b_ref[...]          # bias (f32 epilogue)
        alpha = a_ref[0]                              # PReLU, single shared alpha
        o_ref[0] = jnp.where(acc >= 0.0, acc, alpha * acc).astype(o_ref.dtype)

    return kernel


def upsample_block_forward(x_nchw, w_hwio, bias, alpha, *, upf=2,
                           tm=128, tco=128, use_bf16=True,
                           out_dtype=jnp.bfloat16):
    """UpsampleBlock forward: conv3x3(p=1) -> PixelShuffle(upf) -> PReLU."""
    N, cin, H, W = x_nchw.shape
    kh, kw, wcin, cout = w_hwio.shape
    assert (kh, kw, wcin) == (3, 3, cin), (w_hwio.shape, x_nchw.shape)
    assert cout % (upf * upf) == 0
    nc_out = cout // (upf * upf)

    wp2 = W + 2
    m_out_raw = H * wp2                          # output rows on the padded-width grid
    m_out = _round_up(m_out_raw, tm)             # padded so the grid tiles evenly
    cout_pad = _round_up(cout, tco)              # lane-dense output channels

    # Rows the kernel may touch: last tile base = m_out - tm, largest band
    # starts at base + 2*wp2 and spans tm + 8 rows.
    need_rows = m_out + 2 * wp2 + 8
    bot_pad = -(-need_rows // wp2) - (H + 1)     # extra bottom rows (>= 2)
    m_in = (H + 1 + bot_pad) * wp2

    # ---- layout plumbing (wrapper): NCHW -> NHWC, ONE fused pad, flatten ----
    # The single pad covers ZeroPad2d(1) AND the tail rows needed for the
    # m_out round-up / band over-read (previously two separate HBM pad passes).
    x = jnp.transpose(x_nchw, (0, 2, 3, 1)).astype(jnp.float32)            # NHWC
    xf = jnp.pad(x, ((0, 0), (1, bot_pad), (1, 1), (0, 0))).reshape(N, m_in, cin)

    compute_dtype = jnp.bfloat16 if use_bf16 else jnp.float32
    wmat = w_hwio.reshape(9, cin, cout)
    wmat = jnp.pad(wmat, ((0, 0), (0, 0), (0, cout_pad - cout))).astype(compute_dtype)
    bvec = jnp.pad(bias.astype(jnp.float32), (0, cout_pad - cout)).reshape(1, cout_pad)
    alpha_arr = jnp.asarray(alpha, jnp.float32).reshape(1)

    kernel = _make_kernel(tm, tco, wp2, compute_dtype)

    # x index_map is constant across (ci, mi): the image is fetched only when
    # n changes.  For large images, single-buffer it so only one copy lives in
    # VMEM (needed to fit v7x's 64 MiB VMEM at realistic SRGAN resolutions).
    x_spec_kwargs = {}
    if m_in * cin * 4 > _SINGLE_BUFFER_X_BYTES:
        x_spec_kwargs["pipeline_mode"] = pl.Buffered(buffer_count=1)
    x_spec = pl.BlockSpec((1, m_in, cin), lambda n, ci, mi: (n, 0, 0),
                          **x_spec_kwargs)

    out_itemsize = np.dtype(out_dtype).itemsize
    flops = 2 * N * m_out * (9 * cin) * cout_pad
    bytes_accessed = (xf.size * 4
                      + wmat.size * np.dtype(compute_dtype).itemsize
                      + bvec.size * 4
                      + N * m_out * cout_pad * out_itemsize)

    out = pl.pallas_call(
        kernel,
        out_shape=jax.ShapeDtypeStruct((N, m_out, cout_pad), out_dtype),
        # mi innermost -> per-ci weight/bias blocks stay resident across all
        # m-tiles; all axes independent, so everything is "parallel".
        grid=(N, cout_pad // tco, m_out // tm),
        in_specs=[
            x_spec,
            pl.BlockSpec((9, cin, tco), lambda n, ci, mi: (0, 0, ci)),
            pl.BlockSpec((1, tco), lambda n, ci, mi: (0, ci)),
            pl.BlockSpec(memory_space=pltpu.MemorySpace.SMEM),   # PReLU alpha
        ],
        out_specs=pl.BlockSpec((1, tm, tco), lambda n, ci, mi: (n, mi, ci)),
        compiler_params=pltpu.CompilerParams(
            dimension_semantics=("parallel", "parallel", "parallel"),
            vmem_limit_bytes=_vmem_limit_bytes(),
        ),
        cost_estimate=pl.CostEstimate(
            flops=flops, transcendentals=0, bytes_accessed=bytes_accessed),
    )(xf, wmat, bvec, alpha_arr)

    # ---- layout plumbing: drop pad rows/cols/channels, PixelShuffle, NCHW ----
    # (bf16 halves this traffic vs. the previous f32 output; single transpose.)
    r = upf
    y = out[:, :m_out_raw, :cout].reshape(N, H, wp2, cout)[:, :, :W, :]   # (N,H,W,Cout)
    y = y.reshape(N, H, W, nc_out, r, r)                                  # (n,h,w,c,i,j)
    y = y.transpose(0, 3, 1, 4, 2, 5).reshape(N, nc_out, H * r, W * r)    # NCHW
    return y


# ----------------------------------------------------------------------------
# Pure-JAX reference (f32) for correctness checking
# ----------------------------------------------------------------------------
def _reference(x_nchw, w_hwio, bias, alpha, upf):
    w_oihw = jnp.transpose(w_hwio, (3, 2, 0, 1))
    y = jax.lax.conv_general_dilated(
        x_nchw, w_oihw, window_strides=(1, 1), padding=((1, 1), (1, 1)),
        dimension_numbers=("NCHW", "OIHW", "NCHW"))
    y = y + bias.reshape(1, -1, 1, 1)
    n, c_full, h, w = y.shape
    r = upf
    c = c_full // (r * r)
    y = y.reshape(n, c, r, r, h, w).transpose(0, 1, 4, 2, 5, 3).reshape(n, c, h * r, w * r)
    return jnp.where(y >= 0, y, alpha * y)


if __name__ == "__main__":
    key = jax.random.PRNGKey(0)
    kx, kw, kb = jax.random.split(key, 3)

    # Small shapes consistent with the module: x (N, nc_inp, H, W)
    N, nc_inp, H, W = 2, 4, 16, 16
    nc_out, upf = 8, 2
    cout = nc_out * upf * upf                       # conv output channels = 32

    x = jax.random.normal(kx, (N, nc_inp, H, W), jnp.float32)

    # BNConv2dBlock init: kaiming_normal_(a=1.0, fan_in) -> std = 1/sqrt(9*Cin).
    # (Module zeroes the bias; a small nonzero bias is used here to exercise the
    #  fused bias path — the forward semantics hold for any bias value.)
    fan_in = 9 * nc_inp
    w_hwio = jax.random.normal(kw, (3, 3, nc_inp, cout), jnp.float32) / jnp.sqrt(float(fan_in))
    bias = 0.1 * jax.random.normal(kb, (cout,), jnp.float32)
    alpha = 0.25                                    # PReLU init (single shared param)

    fwd = jax.jit(functools.partial(upsample_block_forward, upf=upf))
    out = fwd(x, w_hwio, bias, alpha)
    jax.block_until_ready(out)

    assert out.shape == (N, nc_out, H * upf, W * upf), out.shape

    ref = _reference(x, w_hwio, bias, alpha, upf)
    np.testing.assert_allclose(np.asarray(out.astype(jnp.float32)), np.asarray(ref),
                               atol=5e-2, rtol=5e-2)

    print("KERNEL_OK")
</pallas_src>

<mosaic_0001>
module attributes {stable_mosaic.version = 11 : i64} {
  func.func @kernel(%arg0: i32, %arg1: i32, %arg2: i32, %arg3: memref<1x432x4xf32, #tpu.memory_space<vmem>>, %arg4: memref<9x4x128xbf16, #tpu.memory_space<vmem>>, %arg5: memref<1x128xf32, #tpu.memory_space<vmem>>, %arg6: memref<1xf32, #tpu.memory_space<smem>>, %arg7: memref<1x128x128xbf16, #tpu.memory_space<vmem>>) attributes {dimension_semantics = [#tpu.dimension_semantics<parallel>, #tpu.dimension_semantics<parallel>, #tpu.dimension_semantics<parallel>], iteration_bounds = array<i64: 2, 1, 3>, scalar_prefetch = 0 : i64, scratch_operands = 0 : i64, tpu.core_type = #tpu.core_type<tc>, window_params = [{transform_indices = @transform_0, window_bounds = array<i64: 1, 432, 4>}, {transform_indices = @transform_1, window_bounds = array<i64: 9, 4, 128>}, {transform_indices = @transform_2, window_bounds = array<i64: 1, 128>}, {transform_indices = @transform_3, window_bounds = array<i64: 1>}, {transform_indices = @transform_4, window_bounds = array<i64: 1, 128, 128>}]} {
    %c128_i32 = arith.constant 128 : i32
    %0 = arith.muli %arg2, %c128_i32 : i32
    %1 = tpu.assume_multiple %0, 128 : i32
    %cst = arith.constant 0.000000e+00 : f32
    %2 = vector.broadcast %cst : f32 to vector<128x128xf32>
    %cst_0 = arith.constant 0.000000e+00 : f32
    %3 = vector.broadcast %cst_0 : f32 to vector<128x128xf32>
    %c0_i32 = arith.constant 0 : i32
    %4 = arith.addi %1, %c0_i32 : i32
    %c0 = arith.constant 0 : index
    %5 = arith.index_cast %4 : i32 to index
    %c0_1 = arith.constant 0 : index
    %6 = vector.load %arg3[%c0, %5, %c0_1] : memref<1x432x4xf32, #tpu.memory_space<vmem>>, vector<1x136x4xf32>
    %7 = vector.shape_cast %6 : vector<1x136x4xf32> to vector<136x4xf32>
    %8 = arith.truncf %7 : vector<136x4xf32> to vector<136x4xbf16>
    %9 = vector.extract_strided_slice %8 {offsets = [0, 0], sizes = [128, 4], strides = [1, 1]} : vector<136x4xbf16> to vector<128x4xbf16>
    %c0_2 = arith.constant 0 : index
    %c0_3 = arith.constant 0 : index
    %c0_4 = arith.constant 0 : index
    %10 = vector.load %arg4[%c0_2, %c0_3, %c0_4] : memref<9x4x128xbf16, #tpu.memory_space<vmem>>, vector<1x4x128xbf16>
    %11 = vector.shape_cast %10 : vector<1x4x128xbf16> to vector<4x128xbf16>
    %cst_5 = arith.constant dense<0.000000e+00> : vector<128x128xf32>
    %12 = tpu.matmul %9, %11, %cst_5 {dimension_numbers = #tpu.dot_dimension_numbers<[1], [0], [0], [1], [0, 0, 1, 1], [], []>} : vector<128x4xbf16>, vector<4x128xbf16>, vector<128x128xf32> -> vector<128x128xf32>
    %13 = arith.addf %2, %12 : vector<128x128xf32>
    %14 = vector.extract_strided_slice %8 {offsets = [1, 0], sizes = [128, 4], strides = [1, 1]} : vector<136x4xbf16> to vector<128x4xbf16>
    %c1 = arith.constant 1 : index
    %c0_6 = arith.constant 0 : index
    %c0_7 = arith.constant 0 : index
    %15 = vector.load %arg4[%c1, %c0_6, %c0_7] : memref<9x4x128xbf16, #tpu.memory_space<vmem>>, vector<1x4x128xbf16>
    %16 = vector.shape_cast %15 : vector<1x4x128xbf16> to vector<4x128xbf16>
    %cst_8 = arith.constant dense<0.000000e+00> : vector<128x128xf32>
    %17 = tpu.matmul %14, %16, %cst_8 {dimension_numbers = #tpu.dot_dimension_numbers<[1], [0], [0], [1], [0, 0, 1, 1], [], []>} : vector<128x4xbf16>, vector<4x128xbf16>, vector<128x128xf32> -> vector<128x128xf32>
    %18 = arith.addf %3, %17 : vector<128x128xf32>
    %19 = vector.extract_strided_slice %8 {offsets = [2, 0], sizes = [128, 4], strides = [1, 1]} : vector<136x4xbf16> to vector<128x4xbf16>
    %c2 = arith.constant 2 : index
    %c0_9 = arith.constant 0 : index
    %c0_10 = arith.constant 0 : index
    %20 = vector.load %arg4[%c2, %c0_9, %c0_10] : memref<9x4x128xbf16, #tpu.memory_space<vmem>>, vector<1x4x128xbf16>
    %21 = vector.shape_cast %20 : vector<1x4x128xbf16> to vector<4x128xbf16>
    %cst_11 = arith.constant dense<0.000000e+00> : vector<128x128xf32>
    %22 = tpu.matmul %19, %21, %cst_11 {dimension_numbers = #tpu.dot_dimension_numbers<[1], [0], [0], [1], [0, 0, 1, 1], [], []>} : vector<128x4xbf16>, vector<4x128xbf16>, vector<128x128xf32> -> vector<128x128xf32>
    %23 = arith.addf %13, %22 : vector<128x128xf32>
    %c18_i32 = arith.constant 18 : i32
    %24 = arith.addi %1, %c18_i32 : i32
    %c0_12 = arith.constant 0 : index
    %25 = arith.index_cast %24 : i32 to index
    %c0_13 = arith.constant 0 : index
    %26 = vector.load %arg3[%c0_12, %25, %c0_13] : memref<1x432x4xf32, #tpu.memory_space<vmem>>, vector<1x136x4xf32>
    %27 = vector.shape_cast %26 : vector<1x136x4xf32> to vector<136x4xf32>
    %28 = arith.truncf %27 : vector<136x4xf32> to vector<136x4xbf16>
    %29 = vector.extract_strided_slice %28 {offsets = [0, 0], sizes = [128, 4], strides = [1, 1]} : vector<136x4xbf16> to vector<128x4xbf16>
    %c3 = arith.constant 3 : index
    %c0_14 = arith.constant 0 : index
    %c0_15 = arith.constant 0 : index
    %30 = vector.load %arg4[%c3, %c0_14, %c0_15] : memref<9x4x128xbf16, #tpu.memory_space<vmem>>, vector<1x4x128xbf16>
    %31 = vector.shape_cast %30 : vector<1x4x128xbf16> to vector<4x128xbf16>
    %cst_16 = arith.constant dense<0.000000e+00> : vector<128x128xf32>
    %32 = tpu.matmul %29, %31, %cst_16 {dimension_numbers = #tpu.dot_dimension_numbers<[1], [0], [0], [1], [0, 0, 1, 1], [], []>} : vector<128x4xbf16>, vector<4x128xbf16>, vector<128x128xf32> -> vector<128x128xf32>
    %33 = arith.addf %18, %32 : vector<128x128xf32>
    %34 = vector.extract_strided_slice %28 {offsets = [1, 0], sizes = [128, 4], strides = [1, 1]} : vector<136x4xbf16> to vector<128x4xbf16>
    %c4 = arith.constant 4 : index
    %c0_17 = arith.constant 0 : index
    %c0_18 = arith.constant 0 : index
    %35 = vector.load %arg4[%c4, %c0_17, %c0_18] : memref<9x4x128xbf16, #tpu.memory_space<vmem>>, vector<1x4x128xbf16>
    %36 = vector.shape_cast %35 : vector<1x4x128xbf16> to vector<4x128xbf16>
    %cst_19 = arith.constant dense<0.000000e+00> : vector<128x128xf32>
    %37 = tpu.matmul %34, %36, %cst_19 {dimension_numbers = #tpu.dot_dimension_numbers<[1], [0], [0], [1], [0, 0, 1, 1], [], []>} : vector<128x4xbf16>, vector<4x128xbf16>, vector<128x128xf32> -> vector<128x128xf32>
    %38 = arith.addf %23, %37 : vector<128x128xf32>
    %39 = vector.extract_strided_slice %28 {offsets = [2, 0], sizes = [128, 4], strides = [1, 1]} : vector<136x4xbf16> to vector<128x4xbf16>
    %c5 = arith.constant 5 : index
    %c0_20 = arith.constant 0 : index
    %c0_21 = arith.constant 0 : index
    %40 = vector.load %arg4[%c5, %c0_20, %c0_21] : memref<9x4x128xbf16, #tpu.memory_space<vmem>>, vector<1x4x128xbf16>
    %41 = vector.shape_cast %40 : vector<1x4x128xbf16> to vector<4x128xbf16>
    %cst_22 = arith.constant dense<0.000000e+00> : vector<128x128xf32>
    %42 = tpu.matmul %39, %41, %cst_22 {dimension_numbers = #tpu.dot_dimension_numbers<[1], [0], [0], [1], [0, 0, 1, 1], [], []>} : vector<128x4xbf16>, vector<4x128xbf16>, vector<128x128xf32> -> vector<128x128xf32>
    %43 = arith.addf %33, %42 : vector<128x128xf32>
    %c36_i32 = arith.constant 36 : i32
    %44 = arith.addi %1, %c36_i32 : i32
    %c0_23 = arith.constant 0 : index
    %45 = arith.index_cast %44 : i32 to index
    %c0_24 = arith.constant 0 : index
    %46 = vector.load %arg3[%c0_23, %45, %c0_24] : memref<1x432x4xf32, #tpu.memory_space<vmem>>, vector<1x136x4xf32>
    %47 = vector.shape_cast %46 : vector<1x136x4xf32> to vector<136x4xf32>
    %48 = arith.truncf %47 : vector<136x4xf32> to vector<136x4xbf16>
    %49 = vector.extract_strided_slice %48 {offsets = [0, 0], sizes = [128, 4], strides = [1, 1]} : vector<136x4xbf16> to vector<128x4xbf16>
    %c6 = arith.constant 6 : index
    %c0_25 = arith.constant 0 : index
    %c0_26 = arith.constant 0 : index
    %50 = vector.load %arg4[%c6, %c0_25, %c0_26] : memref<9x4x128xbf16, #tpu.memory_space<vmem>>, vector<1x4x128xbf16>
    %51 = vector.shape_cast %50 : vector<1x4x128xbf16> to vector<4x128xbf16>
    %cst_27 = arith.constant dense<0.000000e+00> : vector<128x128xf32>
    %52 = tpu.matmul %49, %51, %cst_27 {dimension_numbers = #tpu.dot_dimension_numbers<[1], [0], [0], [1], [0, 0, 1, 1], [], []>} : vector<128x4xbf16>, vector<4x128xbf16>, vector<128x128xf32> -> vector<128x128xf32>
    %53 = arith.addf %38, %52 : vector<128x128xf32>
    %54 = vector.extract_strided_slice %48 {offsets = [1, 0], sizes = [128, 4], strides = [1, 1]} : vector<136x4xbf16> to vector<128x4xbf16>
    %c7 = arith.constant 7 : index
    %c0_28 = arith.constant 0 : index
    %c0_29 = arith.constant 0 : index
    %55 = vector.load %arg4[%c7, %c0_28, %c0_29] : memref<9x4x128xbf16, #tpu.memory_space<vmem>>, vector<1x4x128xbf16>
    %56 = vector.shape_cast %55 : vector<1x4x128xbf16> to vector<4x128xbf16>
    %cst_30 = arith.constant dense<0.000000e+00> : vector<128x128xf32>
    %57 = tpu.matmul %54, %56, %cst_30 {dimension_numbers = #tpu.dot_dimension_numbers<[1], [0], [0], [1], [0, 0, 1, 1], [], []>} : vector<128x4xbf16>, vector<4x128xbf16>, vector<128x128xf32> -> vector<128x128xf32>
    %58 = arith.addf %43, %57 : vector<128x128xf32>
    %59 = vector.extract_strided_slice %48 {offsets = [2, 0], sizes = [128, 4], strides = [1, 1]} : vector<136x4xbf16> to vector<128x4xbf16>
    %c8 = arith.constant 8 : index
    %c0_31 = arith.constant 0 : index
    %c0_32 = arith.constant 0 : index
    %60 = vector.load %arg4[%c8, %c0_31, %c0_32] : memref<9x4x128xbf16, #tpu.memory_space<vmem>>, vector<1x4x128xbf16>
    %61 = vector.shape_cast %60 : vector<1x4x128xbf16> to vector<4x128xbf16>
    %cst_33 = arith.constant dense<0.000000e+00> : vector<128x128xf32>
    %62 = tpu.matmul %59, %61, %cst_33 {dimension_numbers = #tpu.dot_dimension_numbers<[1], [0], [0], [1], [0, 0, 1, 1], [], []>} : vector<128x4xbf16>, vector<4x128xbf16>, vector<128x128xf32> -> vector<128x128xf32>
    %63 = arith.addf %53, %62 : vector<128x128xf32>
    %64 = arith.addf %63, %58 : vector<128x128xf32>
    %c0_34 = arith.constant 0 : index
    %c0_35 = arith.constant 0 : index
    %65 = vector.load %arg5[%c0_34, %c0_35] : memref<1x128xf32, #tpu.memory_space<vmem>>, vector<1x128xf32>
    %66 = vector.broadcast %65 : vector<1x128xf32> to vector<128x128xf32>
    %67 = arith.addf %64, %66 : vector<128x128xf32>
    %c0_36 = arith.constant 0 : index
    %68 = memref.load %arg6[%c0_36] : memref<1xf32, #tpu.memory_space<smem>>
    %cst_37 = arith.constant 0.000000e+00 : f32
    %69 = vector.broadcast %cst_37 : f32 to vector<128x128xf32>
    %70 = arith.cmpf oge, %67, %69 : vector<128x128xf32>
    %71 = vector.broadcast %68 : f32 to vector<128x128xf32>
    %72 = arith.mulf %71, %67 : vector<128x128xf32>
    %73 = arith.select %70, %67, %72 : vector<128x128xi1>, vector<128x128xf32>
    %74 = arith.truncf %73 : vector<128x128xf32> to vector<128x128xbf16>
    %c0_38 = arith.constant 0 : index
    %c0_39 = arith.constant 0 : index
    %c0_40 = arith.constant 0 : index
    %75 = vector.load %arg7[%c0_38, %c0_39, %c0_40] : memref<1x128x128xbf16, #tpu.memory_space<vmem>>, vector<1x128x128xbf16>
    %76 = vector.shape_cast %75 : vector<1x128x128xbf16> to vector<128x128xbf16>
    %77 = vector.shape_cast %74 : vector<128x128xbf16> to vector<1x128x128xbf16>
    tpu.vector_store %arg7[%c0_38, %c0_39, %c0_40], %77 {strides = array<i32>} : memref<1x128x128xbf16, #tpu.memory_space<vmem>>, vector<1x128x128xbf16>,
    return
  }
  func.func @transform_0(%arg0: i32, %arg1: i32, %arg2: i32) -> (i32, i32, i32) {
    %c0_i32 = arith.constant 0 : i32
    %c0_i32_0 = arith.constant 0 : i32
    %c0_i32_1 = arith.constant 0 : i32
    return %arg0, %c0_i32, %c0_i32_0 : i32, i32, i32
  }
  func.func @transform_1(%arg0: i32, %arg1: i32, %arg2: i32) -> (i32, i32, i32) {
    %c0_i32 = arith.constant 0 : i32
    %c0_i32_0 = arith.constant 0 : i32
    %c0_i32_1 = arith.constant 0 : i32
    return %c0_i32, %c0_i32_0, %arg1 : i32, i32, i32
  }
  func.func @transform_2(%arg0: i32, %arg1: i32, %arg2: i32) -> (i32, i32) {
    %c0_i32 = arith.constant 0 : i32
    %c0_i32_0 = arith.constant 0 : i32
    return %c0_i32, %arg1 : i32, i32
  }
  func.func @transform_3(%arg0: i32, %arg1: i32, %arg2: i32) -> i32 {
    %c0_i32 = arith.constant 0 : i32
    %c0_i32_0 = arith.constant 0 : i32
    return %c0_i32 : i32
  }
  func.func @transform_4(%arg0: i32, %arg1: i32, %arg2: i32) -> (i32, i32, i32) {
    %c0_i32 = arith.constant 0 : i32
    return %arg0, %arg2, %arg1 : i32, i32, i32
  }
}

</mosaic_0001>

<llo_original>
// kernel: upsample_block_forward.1
$region0: #{upsample_block_forward.1}
  #allocation0 [shape = 'u32[]', space=smem, size = 0x4, offset = 0x4, fixed_abs, tag = 'smem constant byte address 0x4 - core index']
  #allocation1 [shape = 'u32[144,128]{1,0:T(1,128)}', space=vmem, size = 0x12000, scoped, tag = 'internal scratch']
  #allocation2 [shape = 'f32[1]{0:T(128)S(6)}', space=smem, size = 0x200, scoped, tag = 'scoped memory for upsample_block_forward.1']
  %s0 = inlined_call_operand.vmem [shape: f32[2,432,4], index: 0, kind: input, shape index: {}]
  %s1 = inlined_call_operand.vmem [shape: bf16[9,4,128], index: 1, kind: input, shape index: {}]
  %s2 = inlined_call_operand.vmem [shape: f32[1,128], index: 2, kind: input, shape index: {}]
  %s3 = inlined_call_operand.<no memory space> [shape: f32[1], index: 3, kind: input, shape index: {}]
  %s4 = inlined_call_operand.vmem [shape: bf16[2,384,128], index: 4, kind: output, shape index: {}]
  %s5 = sld [smem:[#allocation0]]
  $region49: #{upsample_block_forward.1} parent=0
    _
  %s7 = ssub.s32 1, %s5
  %s8 = scalar_select 0, %s7, %s5
  %9 = sst [smem:[#allocation2]] %s3
  loop: start=0, step=1, limit=8
  $region2: #{upsample_block_forward.1} parent=0 // loop_pre_header
    _
  $region3: #{upsample_block_forward.1} parent=0 // loop_header
    %s11 = sphi 0, %s15
    %p12 = scmp.ge.s32.totalorder %s11, 8
    %s18 = sphi 0, %s37
    %s19 = sphi 0, %s33
    %s20 = sphi 0, %s29
    %s21 = sphi 0, %s18
    %s22 = sphi 0, %s19
    %s23 = sphi 0, %s20
    %s24 = sphi 0, %s21
    %s25 = sphi 0, %s22
    %s26 = sphi 0, %s23
    %s40 = sphi 0, %s42
    %s43 = sphi 0, %s40
    %s44 = sphi 0, %s43
    %s60 = sphi 0, %s44
    %s66 = sphi 0, %s68
    %s69 = sphi 0, %s66
    %s70 = sphi 0, %s69
    %s86 = sphi 0, %s70
    %s92 = sphi 0, %s94
    %s95 = sphi 0, %s92
    %s96 = sphi 0, %s95
    %s112 = sphi 0, %s96
    %s116 = sphi 0, %s116
    %s118 = sphi 0, %s116
    %s119 = sphi 0, %s118
    %s133 = sphi 0, %s119
    %s143 = sphi 0, %s145
    %s146 = sphi 0, %s143
    %s147 = sphi 0, %s146
    %s163 = sphi 0, %s147
  $region4: #{upsample_block_forward.1} parent=0 // loop_header_branch
    %14 = sbr.rel (%p12) target = $region8
  $region5: #{upsample_block_forward.1} parent=0 // loop_body
    %s16 = ssub.s32 %s11, 1
    %s17 = ssub.s32 %s11, 2
    %s27 = sadd.s32 1, %s20
    %p28 = scmp.ge.s32.totalorder %s27, 3
    %s29 = scalar_select %p28, 0, %s27
    %s30 = sadd.s32 1, %s19
    %s31 = scalar_select %p28, %s30, %s19
    %p32 = scmp.ge.s32.totalorder %s31, 1
    %s33 = scalar_select %p32, 0, %s31
    %s34 = sadd.s32 1, %s18
    %s35 = scalar_select %p32, %s34, %s18
    %p36 = scmp.ge.s32.totalorder %s35, 2
    %s37 = scalar_select %p36, 0, %s35
    %s38 = ssub.s32 %s18, %s37
    %p39 = scmp.eq.s32.totalorder %s38, 0
    %s41 = sadd.s32 %s40, 1
    %s42 = scalar_select %p39, %s40, %s41
    %p45 = pneg %p39
    %p46 = scmp.eq.s32.totalorder %s11, 5
    %p47 = por %p45, %p46
    %p48 = scmp.ne.s32.totalorder %s40, %s43
    %p49 = scmp.eq.s32.totalorder %s11, 0
    %p50 = por %p48, %p49
    %p51 = scmp.ne.s32.totalorder %s40, %s43
    %p52 = scmp.eq.s32.totalorder %s16, 5
    %p53 = por %p51, %p52
    %p54 = scmp.ne.s32.totalorder %s43, %s44
    %p55 = scmp.eq.s32.totalorder %s16, 0
    %p56 = por %p54, %p55
    %p57 = scmp.ne.s32.totalorder %s43, %s44
    %p58 = scmp.eq.s32.totalorder %s17, 5
    %p59 = por %p57, %p58
    %p61 = scmp.ne.s32.totalorder %s44, %s60
    %p62 = scmp.eq.s32.totalorder %s17, 0
    %p63 = por %p61, %p62
    %s64 = ssub.s32 %s19, %s33
    %p65 = scmp.eq.s32.totalorder %s64, 0
    %s67 = sadd.s32 %s66, 1
    %s68 = scalar_select %p65, %s66, %s67
    %p71 = pneg %p65
    %p72 = scmp.eq.s32.totalorder %s11, 5
    %p73 = por %p71, %p72
    %p74 = scmp.ne.s32.totalorder %s66, %s69
    %p75 = scmp.eq.s32.totalorder %s11, 0
    %p76 = por %p74, %p75
    %p77 = scmp.ne.s32.totalorder %s66, %s69
    %p78 = scmp.eq.s32.totalorder %s16, 5
    %p79 = por %p77, %p78
    %p80 = scmp.ne.s32.totalorder %s69, %s70
    %p81 = scmp.eq.s32.totalorder %s16, 0
    %p82 = por %p80, %p81
    %p83 = scmp.ne.s32.totalorder %s69, %s70
    %p84 = scmp.eq.s32.totalorder %s17, 5
    %p85 = por %p83, %p84
    %p87 = scmp.ne.s32.totalorder %s70, %s86
    %p88 = scmp.eq.s32.totalorder %s17, 0
    %p89 = por %p87, %p88
    %s90 = ssub.s32 %s19, %s33
    %p91 = scmp.eq.s32.totalorder %s90, 0
    %s93 = sadd.s32 %s92, 1
    %s94 = scalar_select %p91, %s92, %s93
    %p97 = pneg %p91
    %p98 = scmp.eq.s32.totalorder %s11, 5
    %p99 = por %p97, %p98
    %p100 = scmp.ne.s32.totalorder %s92, %s95
    %p101 = scmp.eq.s32.totalorder %s11, 0
    %p102 = por %p100, %p101
    %p103 = scmp.ne.s32.totalorder %s92, %s95
    %p104 = scmp.eq.s32.totalorder %s16, 5
    %p105 = por %p103, %p104
    %p106 = scmp.ne.s32.totalorder %s95, %s96
    %p107 = scmp.eq.s32.totalorder %s16, 0
    %p108 = por %p106, %p107
    %p109 = scmp.ne.s32.totalorder %s95, %s96
    %p110 = scmp.eq.s32.totalorder %s17, 5
    %p111 = por %p109, %p110
    %p113 = scmp.ne.s32.totalorder %s96, %s112
    %p114 = scmp.eq.s32.totalorder %s17, 0
    %p115 = por %p113, %p114
    %s117 = sadd.s32 %s116, 1
    %p120 = scmp.eq.s32.totalorder %s11, 5
    %p121 = scmp.ne.s32.totalorder %s116, %s118
    %p122 = scmp.eq.s32.totalorder %s11, 0
    %p123 = por %p121, %p122
    %p124 = scmp.ne.s32.totalorder %s116, %s118
    %p125 = scmp.eq.s32.totalorder %s16, 5
    %p126 = por %p124, %p125
    %p127 = scmp.ne.s32.totalorder %s118, %s119
    %p128 = scmp.eq.s32.totalorder %s16, 0
    %p129 = por %p127, %p128
    %p130 = scmp.ne.s32.totalorder %s118, %s119
    %p131 = scmp.eq.s32.totalorder %s17, 5
    %p132 = por %p130, %p131
    %p134 = scmp.ne.s32.totalorder %s119, %s133
    %p135 = scmp.eq.s32.totalorder %s17, 0
    %p136 = por %p134, %p135
    %s137 = ssub.s32 %s18, %s37
    %s138 = ssub.s32 %s20, %s29
    %s139 = sor.u32 %s137, %s138
    %s140 = ssub.s32 %s19, %s33
    %s141 = sor.u32 %s139, %s140
    %p142 = scmp.eq.s32.totalorder %s141, 0
    %s144 = sadd.s32 %s143, 1
    %s145 = scalar_select %p142, %s143, %s144
    %p148 = pneg %p142
    %p149 = scmp.eq.s32.totalorder %s11, 5
    %p150 = por %p148, %p149
    %p151 = scmp.ne.s32.totalorder %s143, %s146
    %p152 = scmp.eq.s32.totalorder %s11, 0
    %p153 = por %p151, %p152
    %p154 = scmp.ne.s32.totalorder %s143, %s146
    %p155 = scmp.eq.s32.totalorder %s16, 5
    %p156 = por %p154, %p155
    %p157 = scmp.ne.s32.totalorder %s146, %s147
    %p158 = scmp.eq.s32.totalorder %s16, 0
    %p159 = por %p157, %p158
    %p160 = scmp.ne.s32.totalorder %s146, %s147
    %p161 = scmp.eq.s32.totalorder %s17, 5
    %p162 = por %p160, %p161
    %p164 = scmp.ne.s32.totalorder %s147, %s163
    %p165 = scmp.eq.s32.totalorder %s17, 0
    %p166 = por %p164, %p165
    %p167 = scmp.le.s32.totalorder 1, %s11
    %p168 = scmp.lt.s32.totalorder %s11, 7
    %p169 = pnand %p167, %p168
    %p170 = pneg %p169
    // Predicated region
    $region9: #{upsample_block_forward.1} parent=5 // pred_check
      _
    $region10: #{upsample_block_forward.1} parent=5 // pred_check_branch
      %172 = sbr.rel (%p169) target = $region12
    $region11: #{upsample_block_forward.1} parent=5 // pred_region
      %s173 = ssub.s32 %s11, 1
      // Predicated region
      $region13: #{upsample_block_forward.1} parent=11 // pred_check
        %p174 = pneg %p82
      $region14: #{upsample_block_forward.1} parent=11 // pred_check_branch
        %176 = sbr.rel (%p174) target = $region16
      $region15: #{upsample_block_forward.1} parent=11 // pred_region
        %p177 = scmp.lt.s32.totalorder %s22, 0
        %s178 = scalar_select %p177, %s22, 0
        %s179 = smul.addr %s178, 2
        %s180 = scalar_lea.vmem %s1, %s179
      $region16: #{upsample_block_forward.1} parent=11 // pred_fallthru
        _
      // Predicated region
      $region17: #{upsample_block_forward.1} parent=11 // pred_check
        %p181 = pneg %p108
      $region18: #{upsample_block_forward.1} parent=11 // pred_check_branch
        %183 = sbr.rel (%p181) target = $region20
      $region19: #{upsample_block_forward.1} parent=11 // pred_region
        %p184 = scmp.lt.s32.totalorder %s22, 0
        %s185 = scalar_select %p184, %s22, 0
        %s186 = scalar_lea.vmem %s2, %s185
      $region20: #{upsample_block_forward.1} parent=11 // pred_fallthru
        _
      // Predicated region
      $region21: #{upsample_block_forward.1} parent=11 // pred_check
        %p187 = pneg %p129
      $region22: #{upsample_block_forward.1} parent=11 // pred_check_branch
        %189 = sbr.rel (%p187) target = $region24
      $region23: #{upsample_block_forward.1} parent=11 // pred_region
        _
      $region24: #{upsample_block_forward.1} parent=11 // pred_fallthru
        _
    $region12: #{upsample_block_forward.1} parent=5 // pred_fallthru
      _
    %p190 = scmp.lt.s32.totalorder %s11, 6
    // Predicated region
    $region25: #{upsample_block_forward.1} parent=5 // pred_check
      %p191 = pneg %p190
    $region26: #{upsample_block_forward.1} parent=5 // pred_check_branch
      %193 = sbr.rel (%p191) target = $region28
    $region27: #{upsample_block_forward.1} parent=5 // pred_region
      // Predicated region
      $region29: #{upsample_block_forward.1} parent=27 // pred_check
        %p194 = pneg %p50
      $region30: #{upsample_block_forward.1} parent=27 // pred_check_branch
        %196 = sbr.rel (%p194) target = $region32
      $region31: #{upsample_block_forward.1} parent=27 // pred_region
        %p197 = scmp.lt.s32.totalorder %s18, 1
        %s198 = scalar_select %p197, %s18, 1
        %s199 = smul.addr %s198, 54
        %s200 = smul.addr %s199, 8
        %s201 = scalar_lea.vmem %s0, %s200
      $region32: #{upsample_block_forward.1} parent=27 // pred_fallthru
        _
    $region28: #{upsample_block_forward.1} parent=5 // pred_fallthru
      _
    %p202 = scmp.le.s32.totalorder 1, %s11
    %p203 = scmp.lt.s32.totalorder %s11, 7
    %p204 = pnand %p202, %p203
    %p205 = pneg %p204
    // Predicated region
    $region33: #{upsample_block_forward.1} parent=5 // pred_check
      _
    $region34: #{upsample_block_forward.1} parent=5 // pred_check_branch
      %207 = sbr.rel (%p204) target = $region36
    $region35: #{upsample_block_forward.1} parent=5 // pred_region
      %s208 = ssub.s32 %s11, 1
      %p209 = scmp.lt.s32.totalorder %s21, 1
      %s210 = scalar_select %p209, %s21, 1
      %s211 = smul.addr %s210, 54
      %s212 = smul.addr %s211, 8
      %s213 = scalar_lea.vmem %s0, %s212
      %p214 = pneg %p56
      %p215 = pneg %p53
      %p216 = scmp.lt.s32.totalorder %s22, 0
      %s217 = scalar_select %p216, %s22, 0
      %s218 = smul.addr %s217, 2
      %s219 = scalar_lea.vmem %s1, %s218
      %p220 = pneg %p82
      %p221 = pneg %p79
      %p222 = scmp.lt.s32.totalorder %s22, 0
      %s223 = scalar_select %p222, %s22, 0
      %s224 = scalar_lea.vmem %s2, %s223
      %p225 = pneg %p108
      %p226 = pneg %p105
      %p227 = pneg %p129
      %p228 = pneg %p126
      %p229 = pneg %p159
      %p230 = pneg %p156
      %s231 = smul.u32 16, %s23
      %p232 = scmp.lt.s32.totalorder %s21, 1
      %s233 = scalar_select %p232, %s21, 1
      %p234 = scmp.lt.s32.totalorder %s231, 47
      %s235 = scalar_select %p234, %s231, 47
      %p236 = scmp.lt.s32.totalorder %s22, 0
      %s237 = scalar_select %p236, %s22, 0
      %s238 = sadd.s32 %s237, %s235
      %s239 = smul.addr %s233, 48
      %s240 = sadd.s32 %s238, %s239
      %s241 = smul.addr %s240, 4
      %s242 = scalar_lea.vmem %s4, %s241
      %p243 = scmp.lt.s32.totalorder %s21, 1
      %s244 = scalar_select %p243, %s21, 1
      %s245 = smul.addr %s244, 54
      %s246 = smul.addr %s245, 8
      %s247 = scalar_lea.vmem %s0, %s246
      %p248 = scmp.lt.s32.totalorder %s22, 0
      %s249 = scalar_select %p248, %s22, 0
      %s250 = smul.addr %s249, 2
      %s251 = scalar_lea.vmem %s1, %s250
      %p252 = scmp.lt.s32.totalorder %s22, 0
      %s253 = scalar_select %p252, %s22, 0
      %s254 = scalar_lea.vmem %s2, %s253
      %s255 = smul.u32 16, %s23
      %p256 = scmp.lt.s32.totalorder %s21, 1
      %s257 = scalar_select %p256, %s21, 1
      %p258 = scmp.lt.s32.totalorder %s255, 47
      %s259 = scalar_select %p258, %s255, 47
      %p260 = scmp.lt.s32.totalorder %s22, 0
      %s261 = scalar_select %p260, %s22, 0
      %s262 = sadd.s32 %s261, %s259
      %s263 = smul.addr %s257, 48
      %s264 = sadd.s32 %s262, %s263
      %s265 = smul.addr %s264, 4
      %s266 = scalar_lea.vmem %s4, %s265
      %s267 = smul.u32 16, %s23
      %s269 = smul.u32 %s23, 128
      %s270 = scalar_lea.vmem %s247, %s269
      %v271 = vld [vmem:[%s270] sm:$0xff]
      %v272 = vld [vmem:[%s270 + $0x8] sm:$0xff]
      %v273 = vld [vmem:[%s270 + $0x10] sm:$0xff]
      %v274 = vld [vmem:[%s270 + $0x18] sm:$0xff]
      %v275 = vld [vmem:[%s270 + $0x20] sm:$0xff]
      %v276 = vld [vmem:[%s270 + $0x28] sm:$0xff]
      %v277 = vld [vmem:[%s270 + $0x30] sm:$0xff]
      %v278 = vld [vmem:[%s270 + $0x38] sm:$0xff]
      %v279 = vld [vmem:[%s270 + $0x40] sm:$0xff]
      %v280 = vld [vmem:[%s270 + $0x48] sm:$0xff]
      %v281 = vld [vmem:[%s270 + $0x50] sm:$0xff]
      %v282 = vld [vmem:[%s270 + $0x58] sm:$0xff]
      %v283 = vld [vmem:[%s270 + $0x60] sm:$0xff]
      %v284 = vld [vmem:[%s270 + $0x68] sm:$0xff]
      %v285 = vld [vmem:[%s270 + $0x70] sm:$0xff]
      %v286 = vld [vmem:[%s270 + $0x78] sm:$0xff]
      %v287 = vld [vmem:[%s270 + $0x80] sm:$0xff]
      %v288 = vpack.c.bf16 %v272, %v271
      %v289 = vpack.c.bf16 %v274, %v273
      %v290 = vpack.c.bf16 %v276, %v275
      %v291 = vpack.c.bf16 %v278, %v277
      %v292 = vpack.c.bf16 %v280, %v279
      %v293 = vpack.c.bf16 %v282, %v281
      %v294 = vpack.c.bf16 %v284, %v283
      %v295 = vpack.c.bf16 %v286, %v285
      %v296 = vpack.c.bf16 %v287, %v287
      %v297 = vld [vmem:[%s251] sm:$0x3]
      %s298 = scalar_lea.vmem %s251, 2
      %v299 = vld [vmem:[%s298] sm:$0x3]
      %s300 = scalar_lea.vmem %s251, 4
      %v301 = vld [vmem:[%s300] sm:$0x3]
      %vm311 = vcmask 1046528
      %v312 = vrot.slane %v288, 1
      %v313 = vrot.slane %v289, 1
      %v314 = vsel %vm311, %v312, %v313
      %v315 = vrot.slane %v290, 1
      %v316 = vsel %vm311, %v313, %v315
      %v317 = vrot.slane %v291, 1
      %v318 = vsel %vm311, %v315, %v317
      %v319 = vrot.slane %v292, 1
      %v320 = vsel %vm311, %v317, %v319
      %v321 = vrot.slane %v293, 1
      %v322 = vsel %vm311, %v319, %v321
      %v323 = vrot.slane %v294, 1
      %v324 = vsel %vm311, %v321, %v323
      %v325 = vrot.slane %v295, 1
      %v326 = vsel %vm311, %v323, %v325
      %v327 = vrot.slane %v296, 1
      %v328 = vsel %vm311, %v325, %v327
      %vm329 = vcmask 31744
      %v331 = vsel %vm329, %v314, 0
      %v334 = vsel %vm329, %v316, 0
      %v337 = vsel %vm329, %v318, 0
      %v340 = vsel %vm329, %v320, 0
      %v343 = vsel %vm329, %v322, 0
      %v346 = vsel %vm329, %v324, 0
      %v349 = vsel %vm329, %v326, 0
      %v352 = vsel %vm329, %v328, 0
      %vm354 = vcmask 1041408
      %v356 = vsel %vm354, %v301, 0
      %358 = vmatprep.subr.bf16.mxu0 0
      %359 = vmatpush1.bf16.msra.mxu0 %v356
      %360 = vmatprep.subr.bf16.mxu0 0
      %361 = vmatpush1.bf16.msra.mxu0 0
      %362 = vmatprep.subr.bf16.mxu0 0
      %363 = vmatpush1.bf16.msra.mxu0 0
      %364 = vmatprep.subr.bf16.mxu0 0
      %365 = vmatpush1.bf16.msra.mxu0 0
      %366 = vmatprep.subr.bf16.mxu0 0
      %367 = vmatpush1.bf16.msra.mxu0 0
      %368 = vmatprep.subr.bf16.mxu0 0
      %369 = vmatpush1.bf16.msra.mxu0 0
      %370 = vmatprep.subr.bf16.mxu0 0
      %371 = vmatpush1.bf16.msra.mxu0 0
      %372 = vmatprep.subr.bf16.mxu0 0
      %373 = vmatpush1.bf16.msra.mxu0 0
      %374 = vmatprep.subr.bf16.mxu0 0
      %375 = vmatpush1.bf16.msra.mxu0 0
      %376 = vmatprep.subr.bf16.mxu0 0
      %377 = vmatpush1.bf16.msra.mxu0 0
      %378 = vmatprep.subr.bf16.mxu0 0
      %379 = vmatpush1.bf16.msra.mxu0 0
      %380 = vmatprep.subr.bf16.mxu0 0
      %381 = vmatpush1.bf16.msra.mxu0 0
      %382 = vmatprep.subr.bf16.mxu0 0
      %383 = vmatpush1.bf16.msra.mxu0 0
      %384 = vmatprep.subr.bf16.mxu0 0
      %385 = vmatpush1.bf16.msra.mxu0 0
      %386 = vmatprep.subr.bf16.mxu0 0
      %387 = vmatpush1.bf16.msra.mxu0 0
      %388 = vmatprep.subr.bf16.mxu0 0
      %389 = vmatpush1.bf16.msra.mxu0 0
      %390 = vmatprep.mubr.bf16.mxu0 0
      %391 = vmatmul.mubr.bf16.gmra.mrb[0].mxu0 %v331
      %v392 = vpop.f32.mrb[0].mxu0
      %v393 = vadd.f32 0.0, %v392
      %v394 = vpop.f32.mrb[0].mxu0
      %v395 = vpop.f32.mrb[0].mxu0
      %v396 = vadd.f32 0.0, %v395
      %v397 = vpop.f32.mrb[0].mxu0
      %398 = vmatprep.mubr.bf16.mxu0 0
      %399 = vmatmul.mubr.bf16.gmra.mrb[0].mxu0 %v334
      %v400 = vpop.f32.mrb[0].mxu0
      %v401 = vadd.f32 0.0, %v400
      %v402 = vpop.f32.mrb[0].mxu0
      %v403 = vpop.f32.mrb[0].mxu0
      %v404 = vadd.f32 0.0, %v403
      %v405 = vpop.f32.mrb[0].mxu0
      %406 = vmatprep.mubr.bf16.mxu0 0
      %407 = vmatmul.mubr.bf16.gmra.mrb[0].mxu0 %v337
      %v408 = vpop.f32.mrb[0].mxu0
      %v409 = vadd.f32 0.0, %v408
      %v410 = vpop.f32.mrb[0].mxu0
      %v411 = vpop.f32.mrb[0].mxu0
      %v412 = vadd.f32 0.0, %v411
      %v413 = vpop.f32.mrb[0].mxu0
      %414 = vmatprep.mubr.bf16.mxu0 0
      %415 = vmatmul.mubr.bf16.gmra.mrb[0].mxu0 %v340
      %v416 = vpop.f32.mrb[0].mxu0
      %v417 = vadd.f32 0.0, %v416
      %v418 = vpop.f32.mrb[0].mxu0
      %v419 = vpop.f32.mrb[0].mxu0
      %v420 = vadd.f32 0.0, %v419
      %v421 = vpop.f32.mrb[0].mxu0
      %422 = vmatprep.mubr.bf16.mxu0 0
      %423 = vmatmul.mubr.bf16.gmra.mrb[0].mxu0 %v343
      %v424 = vpop.f32.mrb[0].mxu0
      %v425 = vadd.f32 0.0, %v424
      %v426 = vpop.f32.mrb[0].mxu0
      %v427 = vpop.f32.mrb[0].mxu0
      %v428 = vadd.f32 0.0, %v427
      %v429 = vpop.f32.mrb[0].mxu0
      %430 = vmatprep.mubr.bf16.mxu0 0
      %431 = vmatmul.mubr.bf16.gmra.mrb[0].mxu0 %v346
      %v432 = vpop.f32.mrb[0].mxu0
      %v433 = vadd.f32 0.0, %v432
      %v434 = vpop.f32.mrb[0].mxu0
      %v435 = vpop.f32.mrb[0].mxu0
      %v436 = vadd.f32 0.0, %v435
      %v437 = vpop.f32.mrb[0].mxu0
      %438 = vmatprep.mubr.bf16.mxu0 0
      %439 = vmatmul.mubr.bf16.gmra.mrb[0].mxu0 %v349
      %v440 = vpop.f32.mrb[0].mxu0
      %v441 = vadd.f32 0.0, %v440
      %v442 = vpop.f32.mrb[0].mxu0
      %v443 = vpop.f32.mrb[0].mxu0
      %v444 = vadd.f32 0.0, %v443
      %v445 = vpop.f32.mrb[0].mxu0
      %446 = vmatprep.mubr.bf16.mxu0 0
      %447 = vmatmul.mubr.bf16.gmra.mrb[0].mxu0 %v352
      %v448 = vpop.f32.mrb[0].mxu0
      %v449 = vadd.f32 0.0, %v448
      %v450 = vpop.f32.mrb[0].mxu0
      %v451 = vpop.f32.mrb[0].mxu0
      %v452 = vadd.f32 0.0, %v451
      %v453 = vpop.f32.mrb[0].mxu0
      %454 = vdwg.mxu0
      %v456 = vsel %vm329, %v288, 0
      %v459 = vsel %vm329, %v289, 0
      %v462 = vsel %vm329, %v290, 0
      %v465 = vsel %vm329, %v291, 0
      %v468 = vsel %vm329, %v292, 0
      %v471 = vsel %vm329, %v293, 0
      %v474 = vsel %vm329, %v294, 0
      %v477 = vsel %vm329, %v295, 0
      %v480 = vsel %vm354, %v297, 0
      %482 = vmatprep.subr.bf16.mxu0 0
      %483 = vmatpush1.bf16.msra.mxu0 %v480
      %484 = vmatprep.subr.bf16.mxu0 0
      %485 = vmatpush1.bf16.msra.mxu0 0
      %486 = vmatprep.subr.bf16.mxu0 0
      %487 = vmatpush1.bf16.msra.mxu0 0
      %488 = vmatprep.subr.bf16.mxu0 0
      %489 = vmatpush1.bf16.msra.mxu0 0
      %490 = vmatprep.subr.bf16.mxu0 0
      %491 = vmatpush1.bf16.msra.mxu0 0
      %492 = vmatprep.subr.bf16.mxu0 0
      %493 = vmatpush1.bf16.msra.mxu0 0
      %494 = vmatprep.subr.bf16.mxu0 0
      %495 = vmatpush1.bf16.msra.mxu0 0
      %496 = vmatprep.subr.bf16.mxu0 0
      %497 = vmatpush1.bf16.msra.mxu0 0
      %498 = vmatprep.subr.bf16.mxu0 0
      %499 = vmatpush1.bf16.msra.mxu0 0
      %500 = vmatprep.subr.bf16.mxu0 0
      %501 = vmatpush1.bf16.msra.mxu0 0
      %502 = vmatprep.subr.bf16.mxu0 0
      %503 = vmatpush1.bf16.msra.mxu0 0
      %504 = vmatprep.subr.bf16.mxu0 0
      %505 = vmatpush1.bf16.msra.mxu0 0
      %506 = vmatprep.subr.bf16.mxu0 0
      %507 = vmatpush1.bf16.msra.mxu0 0
      %508 = vmatprep.subr.bf16.mxu0 0
      %509 = vmatpush1.bf16.msra.mxu0 0
      %510 = vmatprep.subr.bf16.mxu0 0
      %511 = vmatpush1.bf16.msra.mxu0 0
      %512 = vmatprep.subr.bf16.mxu0 0
      %513 = vmatpush1.bf16.msra.mxu0 0
      %514 = vmatprep.mubr.bf16.mxu0 0
      %515 = vmatmul.mubr.bf16.gmra.mrb[0].mxu0 %v456
      %v516 = vpop.f32.mrb[0].mxu0
      %v517 = vadd.f32 %v393, %v516
      %v518 = vpop.f32.mrb[0].mxu0
      %v519 = vpop.f32.mrb[0].mxu0
      %v520 = vadd.f32 %v396, %v519
      %v521 = vpop.f32.mrb[0].mxu0
      %522 = vmatprep.mubr.bf16.mxu0 0
      %523 = vmatmul.mubr.bf16.gmra.mrb[0].mxu0 %v459
      %v524 = vpop.f32.mrb[0].mxu0
      %v525 = vadd.f32 %v401, %v524
      %v526 = vpop.f32.mrb[0].mxu0
      %v527 = vpop.f32.mrb[0].mxu0
      %v528 = vadd.f32 %v404, %v527
      %v529 = vpop.f32.mrb[0].mxu0
      %530 = vmatprep.mubr.bf16.mxu0 0
      %531 = vmatmul.mubr.bf16.gmra.mrb[0].mxu0 %v462
      %v532 = vpop.f32.mrb[0].mxu0
      %v533 = vadd.f32 %v409, %v532
      %v534 = vpop.f32.mrb[0].mxu0
      %v535 = vpop.f32.mrb[0].mxu0
      %v536 = vadd.f32 %v412, %v535
      %v537 = vpop.f32.mrb[0].mxu0
      %538 = vmatprep.mubr.bf16.mxu0 0
      %539 = vmatmul.mubr.bf16.gmra.mrb[0].mxu0 %v465
      %v540 = vpop.f32.mrb[0].mxu0
      %v541 = vadd.f32 %v417, %v540
      %v542 = vpop.f32.mrb[0].mxu0
      %v543 = vpop.f32.mrb[0].mxu0
      %v544 = vadd.f32 %v420, %v543
      %v545 = vpop.f32.mrb[0].mxu0
      %546 = vmatprep.mubr.bf16.mxu0 0
      %547 = vmatmul.mubr.bf16.gmra.mrb[0].mxu0 %v468
      %v548 = vpop.f32.mrb[0].mxu0
      %v549 = vadd.f32 %v425, %v548
      %v550 = vpop.f32.mrb[0].mxu0
      %v551 = vpop.f32.mrb[0].mxu0
      %v552 = vadd.f32 %v428, %v551
      %v553 = vpop.f32.mrb[0].mxu0
      %554 = vmatprep.mubr.bf16.mxu0 0
      %555 = vmatmul.mubr.bf16.gmra.mrb[0].mxu0 %v471
      %v556 = vpop.f32.mrb[0].mxu0
      %v557 = vadd.f32 %v433, %v556
      %v558 = vpop.f32.mrb[0].mxu0
      %v559 = vpop.f32.mrb[0].mxu0
      %v560 = vadd.f32 %v436, %v559
      %v561 = vpop.f32.mrb[0].mxu0
      %562 = vmatprep.mubr.bf16.mxu0 0
      %563 = vmatmul.mubr.bf16.gmra.mrb[0].mxu0 %v474
      %v564 = vpop.f32.mrb[0].mxu0
      %v565 = vadd.f32 %v441, %v564
      %v566 = vpop.f32.mrb[0].mxu0
      %v567 = vpop.f32.mrb[0].mxu0
      %v568 = vadd.f32 %v444, %v567
      %v569 = vpop.f32.mrb[0].mxu0
      %570 = vmatprep.mubr.bf16.mxu0 0
      %571 = vmatmul.mubr.bf16.gmra.mrb[0].mxu0 %v477
      %v572 = vpop.f32.mrb[0].mxu0
      %v573 = vadd.f32 %v449, %v572
      %v574 = vpop.f32.mrb[0].mxu0
      %v575 = vpop.f32.mrb[0].mxu0
      %v576 = vadd.f32 %v452, %v575
      %v577 = vpop.f32.mrb[0].mxu0
      %578 = vdwg.mxu0
      %s579 = sadd.s32 %s269, 18
      %s580 = scalar_lea.vmem %s247, %s579
      %v581 = vld [vmem:[%s580] sm:$0xff]
      %v582 = vld [vmem:[%s580 + $0x8] sm:$0xff]
      %v583 = vld [vmem:[%s580 + $0x10] sm:$0xff]
      %v584 = vld [vmem:[%s580 + $0x18] sm:$0xff]
      %v585 = vld [vmem:[%s580 + $0x20] sm:$0xff]
      %v586 = vld [vmem:[%s580 + $0x28] sm:$0xff]
      %v587 = vld [vmem:[%s580 + $0x30] sm:$0xff]
      %v588 = vld [vmem:[%s580 + $0x38] sm:$0xff]
      %v589 = vld [vmem:[%s580 + $0x40] sm:$0xff]
      %v590 = vld [vmem:[%s580 + $0x48] sm:$0xff]
      %v591 = vld [vmem:[%s580 + $0x50] sm:$0xff]
      %v592 = vld [vmem:[%s580 + $0x58] sm:$0xff]
      %v593 = vld [vmem:[%s580 + $0x60] sm:$0xff]
      %v594 = vld [vmem:[%s580 + $0x68] sm:$0xff]
      %v595 = vld [vmem:[%s580 + $0x70] sm:$0xff]
      %v596 = vld [vmem:[%s580 + $0x78] sm:$0xff]
      %v597 = vld [vmem:[%s580 + $0x80] sm:$0xff]
      %v598 = vpack.c.bf16 %v582, %v581
      %v599 = vpack.c.bf16 %v584, %v583
      %v600 = vpack.c.bf16 %v586, %v585
      %v601 = vpack.c.bf16 %v588, %v587
      %v602 = vpack.c.bf16 %v590, %v589
      %v603 = vpack.c.bf16 %v592, %v591
      %v604 = vpack.c.bf16 %v594, %v593
      %v605 = vpack.c.bf16 %v596, %v595
      %v606 = vpack.c.bf16 %v597, %v597
      %s607 = scalar_lea.vmem %s251, 6
      %v608 = vld [vmem:[%s607] sm:$0x3]
      %v610 = vsel %vm329, %v598, 0
      %v613 = vsel %vm329, %v599, 0
      %v616 = vsel %vm329, %v600, 0
      %v619 = vsel %vm329, %v601, 0
      %v622 = vsel %vm329, %v602, 0
      %v625 = vsel %vm329, %v603, 0
      %v628 = vsel %vm329, %v604, 0
      %v631 = vsel %vm329, %v605, 0
      %v634 = vsel %vm354, %v608, 0
      %636 = vmatprep.subr.bf16.mxu0 0
      %637 = vmatpush1.bf16.msra.mxu0 %v634
      %638 = vmatprep.subr.bf16.mxu0 0
      %639 = vmatpush1.bf16.msra.mxu0 0
      %640 = vmatprep.subr.bf16.mxu0 0
      %641 = vmatpush1.bf16.msra.mxu0 0
      %642 = vmatprep.subr.bf16.mxu0 0
      %643 = vmatpush1.bf16.msra.mxu0 0
      %644 = vmatprep.subr.bf16.mxu0 0
      %645 = vmatpush1.bf16.msra.mxu0 0
      %646 = vmatprep.subr.bf16.mxu0 0
      %647 = vmatpush1.bf16.msra.mxu0 0
      %648 = vmatprep.subr.bf16.mxu0 0
      %649 = vmatpush1.bf16.msra.mxu0 0
      %650 = vmatprep.subr.bf16.mxu0 0
      %651 = vmatpush1.bf16.msra.mxu0 0
      %652 = vmatprep.subr.bf16.mxu0 0
      %653 = vmatpush1.bf16.msra.mxu0 0
      %654 = vmatprep.subr.bf16.mxu0 0
      %655 = vmatpush1.bf16.msra.mxu0 0
      %656 = vmatprep.subr.bf16.mxu0 0
      %657 = vmatpush1.bf16.msra.mxu0 0
      %658 = vmatprep.subr.bf16.mxu0 0
      %659 = vmatpush1.bf16.msra.mxu0 0
      %660 = vmatprep.subr.bf16.mxu0 0
      %661 = vmatpush1.bf16.msra.mxu0 0
      %662 = vmatprep.subr.bf16.mxu0 0
      %663 = vmatpush1.bf16.msra.mxu0 0
      %664 = vmatprep.subr.bf16.mxu0 0
      %665 = vmatpush1.bf16.msra.mxu0 0
      %666 = vmatprep.subr.bf16.mxu0 0
      %667 = vmatpush1.bf16.msra.mxu0 0
      %668 = vmatprep.mubr.bf16.mxu0 0
      %669 = vmatmul.mubr.bf16.gmra.mrb[0].mxu0 %v610
      %v670 = vpop.f32.mrb[0].mxu0
      %v671 = vadd.f32 0.0, %v670
      %v672 = vpop.f32.mrb[0].mxu0
      %v673 = vpop.f32.mrb[0].mxu0
      %v674 = vadd.f32 0.0, %v673
      %v675 = vpop.f32.mrb[0].mxu0
      %676 = vmatprep.mubr.bf16.mxu0 0
      %677 = vmatmul.mubr.bf16.gmra.mrb[0].mxu0 %v613
      %v678 = vpop.f32.mrb[0].mxu0
      %v679 = vadd.f32 0.0, %v678
      %v680 = vpop.f32.mrb[0].mxu0
      %v681 = vpop.f32.mrb[0].mxu0
      %v682 = vadd.f32 0.0, %v681
      %v683 = vpop.f32.mrb[0].mxu0
      %684 = vmatprep.mubr.bf16.mxu0 0
      %685 = vmatmul.mubr.bf16.gmra.mrb[0].mxu0 %v616
      %v686 = vpop.f32.mrb[0].mxu0
      %v687 = vadd.f32 0.0, %v686
      %v688 = vpop.f32.mrb[0].mxu0
      %v689 = vpop.f32.mrb[0].mxu0
      %v690 = vadd.f32 0.0, %v689
      %v691 = vpop.f32.mrb[0].mxu0
      %692 = vmatprep.mubr.bf16.mxu0 0
      %693 = vmatmul.mubr.bf16.gmra.mrb[0].mxu0 %v619
      %v694 = vpop.f32.mrb[0].mxu0
      %v695 = vadd.f32 0.0, %v694
      %v696 = vpop.f32.mrb[0].mxu0
      %v697 = vpop.f32.mrb[0].mxu0
      %v698 = vadd.f32 0.0, %v697
      %v699 = vpop.f32.mrb[0].mxu0
      %700 = vmatprep.mubr.bf16.mxu0 0
      %701 = vmatmul.mubr.bf16.gmra.mrb[0].mxu0 %v622
      %v702 = vpop.f32.mrb[0].mxu0
      %v703 = vadd.f32 0.0, %v702
      %v704 = vpop.f32.mrb[0].mxu0
      %v705 = vpop.f32.mrb[0].mxu0
      %v706 = vadd.f32 0.0, %v705
      %v707 = vpop.f32.mrb[0].mxu0
      %708 = vmatprep.mubr.bf16.mxu0 0
      %709 = vmatmul.mubr.bf16.gmra.mrb[0].mxu0 %v625
      %v710 = vpop.f32.mrb[0].mxu0
      %v711 = vadd.f32 0.0, %v710
      %v712 = vpop.f32.mrb[0].mxu0
      %v713 = vpop.f32.mrb[0].mxu0
      %v714 = vadd.f32 0.0, %v713
      %v715 = vpop.f32.mrb[0].mxu0
      %716 = vmatprep.mubr.bf16.mxu0 0
      %717 = vmatmul.mubr.bf16.gmra.mrb[0].mxu0 %v628
      %v718 = vpop.f32.mrb[0].mxu0
      %v719 = vadd.f32 0.0, %v718
      %v720 = vpop.f32.mrb[0].mxu0
      %v721 = vpop.f32.mrb[0].mxu0
      %v722 = vadd.f32 0.0, %v721
      %v723 = vpop.f32.mrb[0].mxu0
      %724 = vmatprep.mubr.bf16.mxu0 0
      %725 = vmatmul.mubr.bf16.gmra.mrb[0].mxu0 %v631
      %v726 = vpop.f32.mrb[0].mxu0
      %v727 = vadd.f32 0.0, %v726
      %v728 = vpop.f32.mrb[0].mxu0
      %v729 = vpop.f32.mrb[0].mxu0
      %v730 = vadd.f32 0.0, %v729
      %v731 = vpop.f32.mrb[0].mxu0
      %732 = vdwg.mxu0
      %vm733 = vsmask.f32 7424
      %v734 = vshrl.u32 %v288, 16
      %v736 = vshll.u32 %v288, 16
      %v738 = vrot.slane %v736, 1
      %v739 = vor.u32 %v734, %v738
      %v740 = vshll.u32 %v289, 16
      %v742 = vrot.slane %v740, 1
      %v743 = vsel %vm733, %v739, %v742
      %v744 = vshrl.u32 %v289, 16
      %v746 = vor.u32 %v744, %v742
      %v747 = vshll.u32 %v290, 16
      %v749 = vrot.slane %v747, 1
      %v750 = vsel %vm733, %v746, %v749
      %v751 = vshrl.u32 %v290, 16
      %v753 = vor.u32 %v751, %v749
      %v754 = vshll.u32 %v291, 16
      %v756 = vrot.slane %v754, 1
      %v757 = vsel %vm733, %v753, %v756
      %v758 = vshrl.u32 %v291, 16
      %v760 = vor.u32 %v758, %v756
      %v761 = vshll.u32 %v292, 16
      %v763 = vrot.slane %v761, 1
      %v764 = vsel %vm733, %v760, %v763
      %v765 = vshrl.u32 %v292, 16
      %v767 = vor.u32 %v765, %v763
      %v768 = vshll.u32 %v293, 16
      %v770 = vrot.slane %v768, 1
      %v771 = vsel %vm733, %v767, %v770
      %v772 = vshrl.u32 %v293, 16
      %v774 = vor.u32 %v772, %v770
      %v775 = vshll.u32 %v294, 16
      %v777 = vrot.slane %v775, 1
      %v778 = vsel %vm733, %v774, %v777
      %v779 = vshrl.u32 %v294, 16
      %v781 = vor.u32 %v779, %v777
      %v782 = vshll.u32 %v295, 16
      %v784 = vrot.slane %v782, 1
      %v785 = vsel %vm733, %v781, %v784
      %v786 = vshrl.u32 %v295, 16
      %v788 = vor.u32 %v786, %v784
      %v790 = vshll.u32 %v296, 16
      %v792 = vrot.slane %v790, 1
      %v793 = vsel %vm733, %v788, %v792
      %v795 = vsel %vm329, %v743, 0
      %v798 = vsel %vm329, %v750, 0
      %v801 = vsel %vm329, %v757, 0
      %v804 = vsel %vm329, %v764, 0
      %v807 = vsel %vm329, %v771, 0
      %v810 = vsel %vm329, %v778, 0
      %v813 = vsel %vm329, %v785, 0
      %v816 = vsel %vm329, %v793, 0
      %v819 = vsel %vm354, %v299, 0
      %821 = vmatprep.subr.bf16.mxu0 0
      %822 = vmatpush1.bf16.msra.mxu0 %v819
      %823 = vmatprep.subr.bf16.mxu0 0
      %824 = vmatpush1.bf16.msra.mxu0 0
      %825 = vmatprep.subr.bf16.mxu0 0
      %826 = vmatpush1.bf16.msra.mxu0 0
      %827 = vmatprep.subr.bf16.mxu0 0
      %828 = vmatpush1.bf16.msra.mxu0 0
      %829 = vmatprep.subr.bf16.mxu0 0
      %830 = vmatpush1.bf16.msra.mxu0 0
      %831 = vmatprep.subr.bf16.mxu0 0
      %832 = vmatpush1.bf16.msra.mxu0 0
      %833 = vmatprep.subr.bf16.mxu0 0
      %834 = vmatpush1.bf16.msra.mxu0 0
      %835 = vmatprep.subr.bf16.mxu0 0
      %836 = vmatpush1.bf16.msra.mxu0 0
      %837 = vmatprep.subr.bf16.mxu0 0
      %838 = vmatpush1.bf16.msra.mxu0 0
      %839 = vmatprep.subr.bf16.mxu0 0
      %840 = vmatpush1.bf16.msra.mxu0 0
      %841 = vmatprep.subr.bf16.mxu0 0
      %842 = vmatpush1.bf16.msra.mxu0 0
      %843 = vmatprep.subr.bf16.mxu0 0
      %844 = vmatpush1.bf16.msra.mxu0 0
      %845 = vmatprep.subr.bf16.mxu0 0
      %846 = vmatpush1.bf16.msra.mxu0 0
      %847 = vmatprep.subr.bf16.mxu0 0
      %848 = vmatpush1.bf16.msra.mxu0 0
      %849 = vmatprep.subr.bf16.mxu0 0
      %850 = vmatpush1.bf16.msra.mxu0 0
      %851 = vmatprep.subr.bf16.mxu0 0
      %852 = vmatpush1.bf16.msra.mxu0 0
      %853 = vmatprep.mubr.bf16.mxu0 0
      %854 = vmatmul.mubr.bf16.gmra.mrb[0].mxu0 %v795
      %v855 = vpop.f32.mrb[0].mxu0
      %v856 = vadd.f32 %v671, %v855
      %v857 = vpop.f32.mrb[0].mxu0
      %v858 = vpop.f32.mrb[0].mxu0
      %v859 = vadd.f32 %v674, %v858
      %v860 = vpop.f32.mrb[0].mxu0
      %861 = vmatprep.mubr.bf16.mxu0 0
      %862 = vmatmul.mubr.bf16.gmra.mrb[0].mxu0 %v798
      %v863 = vpop.f32.mrb[0].mxu0
      %v864 = vadd.f32 %v679, %v863
      %v865 = vpop.f32.mrb[0].mxu0
      %v866 = vpop.f32.mrb[0].mxu0
      %v867 = vadd.f32 %v682, %v866
      %v868 = vpop.f32.mrb[0].mxu0
      %869 = vmatprep.mubr.bf16.mxu0 0
      %870 = vmatmul.mubr.bf16.gmra.mrb[0].mxu0 %v801
      %v871 = vpop.f32.mrb[0].mxu0
      %v872 = vadd.f32 %v687, %v871
      %v873 = vpop.f32.mrb[0].mxu0
      %v874 = vpop.f32.mrb[0].mxu0
      %v875 = vadd.f32 %v690, %v874
      %v876 = vpop.f32.mrb[0].mxu0
      %877 = vmatprep.mubr.bf16.mxu0 0
      %878 = vmatmul.mubr.bf16.gmra.mrb[0].mxu0 %v804
      %v879 = vpop.f32.mrb[0].mxu0
      %v880 = vadd.f32 %v695, %v879
      %v881 = vpop.f32.mrb[0].mxu0
      %v882 = vpop.f32.mrb[0].mxu0
      %v883 = vadd.f32 %v698, %v882
      %v884 = vpop.f32.mrb[0].mxu0
      %885 = vmatprep.mubr.bf16.mxu0 0
      %886 = vmatmul.mubr.bf16.gmra.mrb[0].mxu0 %v807
      %v887 = vpop.f32.mrb[0].mxu0
      %v888 = vadd.f32 %v703, %v887
      %v889 = vpop.f32.mrb[0].mxu0
      %v890 = vpop.f32.mrb[0].mxu0
      %v891 = vadd.f32 %v706, %v890
      %v892 = vpop.f32.mrb[0].mxu0
      %893 = vmatprep.mubr.bf16.mxu0 0
      %894 = vmatmul.mubr.bf16.gmra.mrb[0].mxu0 %v810
      %v895 = vpop.f32.mrb[0].mxu0
      %v896 = vadd.f32 %v711, %v895
      %v897 = vpop.f32.mrb[0].mxu0
      %v898 = vpop.f32.mrb[0].mxu0
      %v899 = vadd.f32 %v714, %v898
      %v900 = vpop.f32.mrb[0].mxu0
      %901 = vmatprep.mubr.bf16.mxu0 0
      %902 = vmatmul.mubr.bf16.gmra.mrb[0].mxu0 %v813
      %v903 = vpop.f32.mrb[0].mxu0
      %v904 = vadd.f32 %v719, %v903
      %v905 = vpop.f32.mrb[0].mxu0
      %v906 = vpop.f32.mrb[0].mxu0
      %v907 = vadd.f32 %v722, %v906
      %v908 = vpop.f32.mrb[0].mxu0
      %909 = vmatprep.mubr.bf16.mxu0 0
      %910 = vmatmul.mubr.bf16.gmra.mrb[0].mxu0 %v816
      %v911 = vpop.f32.mrb[0].mxu0
      %v912 = vadd.f32 %v727, %v911
      %v913 = vpop.f32.mrb[0].mxu0
      %v914 = vpop.f32.mrb[0].mxu0
      %v915 = vadd.f32 %v730, %v914
      %v916 = vpop.f32.mrb[0].mxu0
      %917 = vdwg.mxu0
      %s918 = scalar_lea.vmem %s251, 8
      %v919 = vld [vmem:[%s918] sm:$0x3]
      %v920 = vshrl.u32 %v598, 16
      %v922 = vshll.u32 %v598, 16
      %v924 = vrot.slane %v922, 1
      %v925 = vor.u32 %v920, %v924
      %v926 = vshll.u32 %v599, 16
      %v928 = vrot.slane %v926, 1
      %v929 = vsel %vm733, %v925, %v928
      %v930 = vshrl.u32 %v599, 16
      %v932 = vor.u32 %v930, %v928
      %v933 = vshll.u32 %v600, 16
      %v935 = vrot.slane %v933, 1
      %v936 = vsel %vm733, %v932, %v935
      %v937 = vshrl.u32 %v600, 16
      %v939 = vor.u32 %v937, %v935
      %v940 = vshll.u32 %v601, 16
      %v942 = vrot.slane %v940, 1
      %v943 = vsel %vm733, %v939, %v942
      %v944 = vshrl.u32 %v601, 16
      %v946 = vor.u32 %v944, %v942
      %v947 = vshll.u32 %v602, 16
      %v949 = vrot.slane %v947, 1
      %v950 = vsel %vm733, %v946, %v949
      %v951 = vshrl.u32 %v602, 16
      %v953 = vor.u32 %v951, %v949
      %v954 = vshll.u32 %v603, 16
      %v956 = vrot.slane %v954, 1
      %v957 = vsel %vm733, %v953, %v956
      %v958 = vshrl.u32 %v603, 16
      %v960 = vor.u32 %v958, %v956
      %v961 = vshll.u32 %v604, 16
      %v963 = vrot.slane %v961, 1
      %v964 = vsel %vm733, %v960, %v963
      %v965 = vshrl.u32 %v604, 16
      %v967 = vor.u32 %v965, %v963
      %v968 = vshll.u32 %v605, 16
      %v970 = vrot.slane %v968, 1
      %v971 = vsel %vm733, %v967, %v970
      %v972 = vshrl.u32 %v605, 16
      %v974 = vor.u32 %v972, %v970
      %v976 = vshll.u32 %v606, 16
      %v978 = vrot.slane %v976, 1
      %v979 = vsel %vm733, %v974, %v978
      %v981 = vsel %vm329, %v929, 0
      %v984 = vsel %vm329, %v936, 0
      %v987 = vsel %vm329, %v943, 0
      %v990 = vsel %vm329, %v950, 0
      %v993 = vsel %vm329, %v957, 0
      %v996 = vsel %vm329, %v964, 0
      %v999 = vsel %vm329, %v971, 0
      %v1002 = vsel %vm329, %v979, 0
      %v1005 = vsel %vm354, %v919, 0
      %1007 = vmatprep.subr.bf16.mxu0 0
      %1008 = vmatpush1.bf16.msra.mxu0 %v1005
      %1009 = vmatprep.subr.bf16.mxu0 0
      %1010 = vmatpush1.bf16.msra.mxu0 0
      %1011 = vmatprep.subr.bf16.mxu0 0
      %1012 = vmatpush1.bf16.msra.mxu0 0
      %1013 = vmatprep.subr.bf16.mxu0 0
      %1014 = vmatpush1.bf16.msra.mxu0 0
      %1015 = vmatprep.subr.bf16.mxu0 0
      %1016 = vmatpush1.bf16.msra.mxu0 0
      %1017 = vmatprep.subr.bf16.mxu0 0
      %1018 = vmatpush1.bf16.msra.mxu0 0
      %1019 = vmatprep.subr.bf16.mxu0 0
      %1020 = vmatpush1.bf16.msra.mxu0 0
      %1021 = vmatprep.subr.bf16.mxu0 0
      %1022 = vmatpush1.bf16.msra.mxu0 0
      %1023 = vmatprep.subr.bf16.mxu0 0
      %1024 = vmatpush1.bf16.msra.mxu0 0
      %1025 = vmatprep.subr.bf16.mxu0 0
      %1026 = vmatpush1.bf16.msra.mxu0 0
      %1027 = vmatprep.subr.bf16.mxu0 0
      %1028 = vmatpush1.bf16.msra.mxu0 0
      %1029 = vmatprep.subr.bf16.mxu0 0
      %1030 = vmatpush1.bf16.msra.mxu0 0
      %1031 = vmatprep.subr.bf16.mxu0 0
      %1032 = vmatpush1.bf16.msra.mxu0 0
      %1033 = vmatprep.subr.bf16.mxu0 0
      %1034 = vmatpush1.bf16.msra.mxu0 0
      %1035 = vmatprep.subr.bf16.mxu0 0
      %1036 = vmatpush1.bf16.msra.mxu0 0
      %1037 = vmatprep.subr.bf16.mxu0 0
      %1038 = vmatpush1.bf16.msra.mxu0 0
      %1039 = vmatprep.mubr.bf16.mxu0 0
      %1040 = vmatmul.mubr.bf16.gmra.mrb[0].mxu0 %v981
      %v1041 = vpop.f32.mrb[0].mxu0
      %v1042 = vadd.f32 0.0, %v1041
      %v1043 = vpop.f32.mrb[0].mxu0
      %v1044 = vpop.f32.mrb[0].mxu0
      %v1045 = vadd.f32 0.0, %v1044
      %v1046 = vpop.f32.mrb[0].mxu0
      %1047 = vmatprep.mubr.bf16.mxu0 0
      %1048 = vmatmul.mubr.bf16.gmra.mrb[0].mxu0 %v984
      %v1049 = vpop.f32.mrb[0].mxu0
      %v1050 = vadd.f32 0.0, %v1049
      %v1051 = vpop.f32.mrb[0].mxu0
      %v1052 = vpop.f32.mrb[0].mxu0
      %v1053 = vadd.f32 0.0, %v1052
      %v1054 = vpop.f32.mrb[0].mxu0
      %1055 = vmatprep.mubr.bf16.mxu0 0
      %1056 = vmatmul.mubr.bf16.gmra.mrb[0].mxu0 %v987
      %v1057 = vpop.f32.mrb[0].mxu0
      %v1058 = vadd.f32 0.0, %v1057
      %v1059 = vpop.f32.mrb[0].mxu0
      %v1060 = vpop.f32.mrb[0].mxu0
      %v1061 = vadd.f32 0.0, %v1060
      %v1062 = vpop.f32.mrb[0].mxu0
      %1063 = vmatprep.mubr.bf16.mxu0 0
      %1064 = vmatmul.mubr.bf16.gmra.mrb[0].mxu0 %v990
      %v1065 = vpop.f32.mrb[0].mxu0
      %v1066 = vadd.f32 0.0, %v1065
      %v1067 = vpop.f32.mrb[0].mxu0
      %v1068 = vpop.f32.mrb[0].mxu0
      %v1069 = vadd.f32 0.0, %v1068
      %v1070 = vpop.f32.mrb[0].mxu0
      %1071 = vmatprep.mubr.bf16.mxu0 0
      %1072 = vmatmul.mubr.bf16.gmra.mrb[0].mxu0 %v993
      %v1073 = vpop.f32.mrb[0].mxu0
      %v1074 = vadd.f32 0.0, %v1073
      %v1075 = vpop.f32.mrb[0].mxu0
      %v1076 = vpop.f32.mrb[0].mxu0
      %v1077 = vadd.f32 0.0, %v1076
      %v1078 = vpop.f32.mrb[0].mxu0
      %1079 = vmatprep.mubr.bf16.mxu0 0
      %1080 = vmatmul.mubr.bf16.gmra.mrb[0].mxu0 %v996
      %v1081 = vpop.f32.mrb[0].mxu0
      %v1082 = vadd.f32 0.0, %v1081
      %v1083 = vpop.f32.mrb[0].mxu0
      %v1084 = vpop.f32.mrb[0].mxu0
      %v1085 = vadd.f32 0.0, %v1084
      %v1086 = vpop.f32.mrb[0].mxu0
      %1087 = vmatprep.mubr.bf16.mxu0 0
      %1088 = vmatmul.mubr.bf16.gmra.mrb[0].mxu0 %v999
      %v1089 = vpop.f32.mrb[0].mxu0
      %v1090 = vadd.f32 0.0, %v1089
      %v1091 = vpop.f32.mrb[0].mxu0
      %v1092 = vpop.f32.mrb[0].mxu0
      %v1093 = vadd.f32 0.0, %v1092
      %v1094 = vpop.f32.mrb[0].mxu0
      %1095 = vmatprep.mubr.bf16.mxu0 0
      %1096 = vmatmul.mubr.bf16.gmra.mrb[0].mxu0 %v1002
      %v1097 = vpop.f32.mrb[0].mxu0
      %v1098 = vadd.f32 0.0, %v1097
      %v1099 = vpop.f32.mrb[0].mxu0
      %v1100 = vpop.f32.mrb[0].mxu0
      %v1101 = vadd.f32 0.0, %v1100
      %v1102 = vpop.f32.mrb[0].mxu0
      %1103 = vdwg.mxu0
      %v1104 = vadd.f32 %v517, %v1042
      %v1105 = vadd.f32 %v520, %v1045
      %v1106 = vadd.f32 %v525, %v1050
      %v1107 = vadd.f32 %v528, %v1053
      %v1108 = vadd.f32 %v533, %v1058
      %v1109 = vadd.f32 %v536, %v1061
      %v1110 = vadd.f32 %v541, %v1066
      %v1111 = vadd.f32 %v544, %v1069
      %v1112 = vadd.f32 %v549, %v1074
      %v1113 = vadd.f32 %v552, %v1077
      %v1114 = vadd.f32 %v557, %v1082
      %v1115 = vadd.f32 %v560, %v1085
      %v1116 = vadd.f32 %v565, %v1090
      %v1117 = vadd.f32 %v568, %v1093
      %v1118 = vadd.f32 %v573, %v1098
      %v1119 = vadd.f32 %v576, %v1101
      %s1120 = scalar_lea.vmem %s251, 10
      %v1121 = vld [vmem:[%s1120] sm:$0x3]
      %v1131 = vrot.slane %v598, 1
      %v1132 = vrot.slane %v599, 1
      %v1133 = vsel %vm311, %v1131, %v1132
      %v1134 = vrot.slane %v600, 1
      %v1135 = vsel %vm311, %v1132, %v1134
      %v1136 = vrot.slane %v601, 1
      %v1137 = vsel %vm311, %v1134, %v1136
      %v1138 = vrot.slane %v602, 1
      %v1139 = vsel %vm311, %v1136, %v1138
      %v1140 = vrot.slane %v603, 1
      %v1141 = vsel %vm311, %v1138, %v1140
      %v1142 = vrot.slane %v604, 1
      %v1143 = vsel %vm311, %v1140, %v1142
      %v1144 = vrot.slane %v605, 1
      %v1145 = vsel %vm311, %v1142, %v1144
      %v1146 = vrot.slane %v606, 1
      %v1147 = vsel %vm311, %v1144, %v1146
      %v1149 = vsel %vm329, %v1133, 0
      %v1152 = vsel %vm329, %v1135, 0
      %v1155 = vsel %vm329, %v1137, 0
      %v1158 = vsel %vm329, %v1139, 0
      %v1161 = vsel %vm329, %v1141, 0
      %v1164 = vsel %vm329, %v1143, 0
      %v1167 = vsel %vm329, %v1145, 0
      %v1170 = vsel %vm329, %v1147, 0
      %v1173 = vsel %vm354, %v1121, 0
      %1175 = vmatprep.subr.bf16.mxu0 0
      %1176 = vmatpush1.bf16.msra.mxu0 %v1173
      %1177 = vmatprep.subr.bf16.mxu0 0
      %1178 = vmatpush1.bf16.msra.mxu0 0
      %1179 = vmatprep.subr.bf16.mxu0 0
      %1180 = vmatpush1.bf16.msra.mxu0 0
      %1181 = vmatprep.subr.bf16.mxu0 0
      %1182 = vmatpush1.bf16.msra.mxu0 0
      %1183 = vmatprep.subr.bf16.mxu0 0
      %1184 = vmatpush1.bf16.msra.mxu0 0
      %1185 = vmatprep.subr.bf16.mxu0 0
      %1186 = vmatpush1.bf16.msra.mxu0 0
      %1187 = vmatprep.subr.bf16.mxu0 0
      %1188 = vmatpush1.bf16.msra.mxu0 0
      %1189 = vmatprep.subr.bf16.mxu0 0
      %1190 = vmatpush1.bf16.msra.mxu0 0
      %1191 = vmatprep.subr.bf16.mxu0 0
      %1192 = vmatpush1.bf16.msra.mxu0 0
      %1193 = vmatprep.subr.bf16.mxu0 0
      %1194 = vmatpush1.bf16.msra.mxu0 0
      %1195 = vmatprep.subr.bf16.mxu0 0
      %1196 = vmatpush1.bf16.msra.mxu0 0
      %1197 = vmatprep.subr.bf16.mxu0 0
      %1198 = vmatpush1.bf16.msra.mxu0 0
      %1199 = vmatprep.subr.bf16.mxu0 0
      %1200 = vmatpush1.bf16.msra.mxu0 0
      %1201 = vmatprep.subr.bf16.mxu0 0
      %1202 = vmatpush1.bf16.msra.mxu0 0
      %1203 = vmatprep.subr.bf16.mxu0 0
      %1204 = vmatpush1.bf16.msra.mxu0 0
      %1205 = vmatprep.subr.bf16.mxu0 0
      %1206 = vmatpush1.bf16.msra.mxu0 0
      %1207 = vmatprep.mubr.bf16.mxu0 0
      %1208 = vmatmul.mubr.bf16.gmra.mrb[0].mxu0 %v1149
      %v1209 = vpop.f32.mrb[0].mxu0
      %v1210 = vadd.f32 0.0, %v1209
      %v1211 = vpop.f32.mrb[0].mxu0
      %v1212 = vpop.f32.mrb[0].mxu0
      %v1213 = vadd.f32 0.0, %v1212
      %v1214 = vpop.f32.mrb[0].mxu0
      %1215 = vmatprep.mubr.bf16.mxu0 0
      %1216 = vmatmul.mubr.bf16.gmra.mrb[0].mxu0 %v1152
      %v1217 = vpop.f32.mrb[0].mxu0
      %v1218 = vadd.f32 0.0, %v1217
      %v1219 = vpop.f32.mrb[0].mxu0
      %v1220 = vpop.f32.mrb[0].mxu0
      %v1221 = vadd.f32 0.0, %v1220
      %v1222 = vpop.f32.mrb[0].mxu0
      %1223 = vmatprep.mubr.bf16.mxu0 0
      %1224 = vmatmul.mubr.bf16.gmra.mrb[0].mxu0 %v1155
      %v1225 = vpop.f32.mrb[0].mxu0
      %v1226 = vadd.f32 0.0, %v1225
      %v1227 = vpop.f32.mrb[0].mxu0
      %v1228 = vpop.f32.mrb[0].mxu0
      %v1229 = vadd.f32 0.0, %v1228
      %v1230 = vpop.f32.mrb[0].mxu0
      %1231 = vmatprep.mubr.bf16.mxu0 0
      %1232 = vmatmul.mubr.bf16.gmra.mrb[0].mxu0 %v1158
      %v1233 = vpop.f32.mrb[0].mxu0
      %v1234 = vadd.f32 0.0, %v1233
      %v1235 = vpop.f32.mrb[0].mxu0
      %v1236 = vpop.f32.mrb[0].mxu0
      %v1237 = vadd.f32 0.0, %v1236
      %v1238 = vpop.f32.mrb[0].mxu0
      %1239 = vmatprep.mubr.bf16.mxu0 0
      %1240 = vmatmul.mubr.bf16.gmra.mrb[0].mxu0 %v1161
      %v1241 = vpop.f32.mrb[0].mxu0
      %v1242 = vadd.f32 0.0, %v1241
      %v1243 = vpop.f32.mrb[0].mxu0
      %v1244 = vpop.f32.mrb[0].mxu0
      %v1245 = vadd.f32 0.0, %v1244
      %v1246 = vpop.f32.mrb[0].mxu0
      %1247 = vmatprep.mubr.bf16.mxu0 0
      %1248 = vmatmul.mubr.bf16.gmra.mrb[0].mxu0 %v1164
      %v1249 = vpop.f32.mrb[0].mxu0
      %v1250 = vadd.f32 0.0, %v1249
      %v1251 = vpop.f32.mrb[0].mxu0
      %v1252 = vpop.f32.mrb[0].mxu0
      %v1253 = vadd.f32 0.0, %v1252
      %v1254 = vpop.f32.mrb[0].mxu0
      %1255 = vmatprep.mubr.bf16.mxu0 0
      %1256 = vmatmul.mubr.bf16.gmra.mrb[0].mxu0 %v1167
      %v1257 = vpop.f32.mrb[0].mxu0
      %v1258 = vadd.f32 0.0, %v1257
      %v1259 = vpop.f32.mrb[0].mxu0
      %v1260 = vpop.f32.mrb[0].mxu0
      %v1261 = vadd.f32 0.0, %v1260
      %v1262 = vpop.f32.mrb[0].mxu0
      %1263 = vmatprep.mubr.bf16.mxu0 0
      %1264 = vmatmul.mubr.bf16.gmra.mrb[0].mxu0 %v1170
      %v1265 = vpop.f32.mrb[0].mxu0
      %v1266 = vadd.f32 0.0, %v1265
      %v1267 = vpop.f32.mrb[0].mxu0
      %v1268 = vpop.f32.mrb[0].mxu0
      %v1269 = vadd.f32 0.0, %v1268
      %v1270 = vpop.f32.mrb[0].mxu0
      %1271 = vdwg.mxu0
      %v1272 = vadd.f32 %v856, %v1210
      %v1273 = vadd.f32 %v859, %v1213
      %v1274 = vadd.f32 %v864, %v1218
      %v1275 = vadd.f32 %v867, %v1221
      %v1276 = vadd.f32 %v872, %v1226
      %v1277 = vadd.f32 %v875, %v1229
      %v1278 = vadd.f32 %v880, %v1234
      %v1279 = vadd.f32 %v883, %v1237
      %v1280 = vadd.f32 %v888, %v1242
      %v1281 = vadd.f32 %v891, %v1245
      %v1282 = vadd.f32 %v896, %v1250
      %v1283 = vadd.f32 %v899, %v1253
      %v1284 = vadd.f32 %v904, %v1258
      %v1285 = vadd.f32 %v907, %v1261
      %v1286 = vadd.f32 %v912, %v1266
      %v1287 = vadd.f32 %v915, %v1269
      %s1288 = sadd.s32 %s269, 36
      %s1289 = scalar_lea.vmem %s247, %s1288
      %v1290 = vld [vmem:[%s1289] sm:$0xff]
      %v1291 = vld [vmem:[%s1289 + $0x8] sm:$0xff]
      %v1292 = vld [vmem:[%s1289 + $0x10] sm:$0xff]
      %v1293 = vld [vmem:[%s1289 + $0x18] sm:$0xff]
      %v1294 = vld [vmem:[%s1289 + $0x20] sm:$0xff]
      %v1295 = vld [vmem:[%s1289 + $0x28] sm:$0xff]
      %v1296 = vld [vmem:[%s1289 + $0x30] sm:$0xff]
      %v1297 = vld [vmem:[%s1289 + $0x38] sm:$0xff]
      %v1298 = vld [vmem:[%s1289 + $0x40] sm:$0xff]
      %v1299 = vld [vmem:[%s1289 + $0x48] sm:$0xff]
      %v1300 = vld [vmem:[%s1289 + $0x50] sm:$0xff]
      %v1301 = vld [vmem:[%s1289 + $0x58] sm:$0xff]
      %v1302 = vld [vmem:[%s1289 + $0x60] sm:$0xff]
      %v1303 = vld [vmem:[%s1289 + $0x68] sm:$0xff]
      %v1304 = vld [vmem:[%s1289 + $0x70] sm:$0xff]
      %v1305 = vld [vmem:[%s1289 + $0x78] sm:$0xff]
      %v1306 = vld [vmem:[%s1289 + $0x80] sm:$0xff]
      %v1307 = vpack.c.bf16 %v1291, %v1290
      %v1308 = vpack.c.bf16 %v1293, %v1292
      %v1309 = vpack.c.bf16 %v1295, %v1294
      %v1310 = vpack.c.bf16 %v1297, %v1296
      %v1311 = vpack.c.bf16 %v1299, %v1298
      %v1312 = vpack.c.bf16 %v1301, %v1300
      %v1313 = vpack.c.bf16 %v1303, %v1302
      %v1314 = vpack.c.bf16 %v1305, %v1304
      %v1315 = vpack.c.bf16 %v1306, %v1306
      %s1316 = scalar_lea.vmem %s251, 12
      %v1317 = vld [vmem:[%s1316] sm:$0x3]
      %v1319 = vsel %vm329, %v1307, 0
      %v1322 = vsel %vm329, %v1308, 0
      %v1325 = vsel %vm329, %v1309, 0
      %v1328 = vsel %vm329, %v1310, 0
      %v1331 = vsel %vm329, %v1311, 0
      %v1334 = vsel %vm329, %v1312, 0
      %v1337 = vsel %vm329, %v1313, 0
      %v1340 = vsel %vm329, %v1314, 0
      %v1343 = vsel %vm354, %v1317, 0
      %1345 = vmatprep.subr.bf16.mxu0 0
      %1346 = vmatpush1.bf16.msra.mxu0 %v1343
      %1347 = vmatprep.subr.bf16.mxu0 0
      %1348 = vmatpush1.bf16.msra.mxu0 0
      %1349 = vmatprep.subr.bf16.mxu0 0
      %1350 = vmatpush1.bf16.msra.mxu0 0
      %1351 = vmatprep.subr.bf16.mxu0 0
      %1352 = vmatpush1.bf16.msra.mxu0 0
      %1353 = vmatprep.subr.bf16.mxu0 0
      %1354 = vmatpush1.bf16.msra.mxu0 0
      %1355 = vmatprep.subr.bf16.mxu0 0
      %1356 = vmatpush1.bf16.msra.mxu0 0
      %1357 = vmatprep.subr.bf16.mxu0 0
      %1358 = vmatpush1.bf16.msra.mxu0 0
      %1359 = vmatprep.subr.bf16.mxu0 0
      %1360 = vmatpush1.bf16.msra.mxu0 0
      %1361 = vmatprep.subr.bf16.mxu0 0
      %1362 = vmatpush1.bf16.msra.mxu0 0
      %1363 = vmatprep.subr.bf16.mxu0 0
      %1364 = vmatpush1.bf16.msra.mxu0 0
      %1365 = vmatprep.subr.bf16.mxu0 0
      %1366 = vmatpush1.bf16.msra.mxu0 0
      %1367 = vmatprep.subr.bf16.mxu0 0
      %1368 = vmatpush1.bf16.msra.mxu0 0
      %1369 = vmatprep.subr.bf16.mxu0 0
      %1370 = vmatpush1.bf16.msra.mxu0 0
      %1371 = vmatprep.subr.bf16.mxu0 0
      %1372 = vmatpush1.bf16.msra.mxu0 0
      %1373 = vmatprep.subr.bf16.mxu0 0
      %1374 = vmatpush1.bf16.msra.mxu0 0
      %1375 = vmatprep.subr.bf16.mxu0 0
      %1376 = vmatpush1.bf16.msra.mxu0 0
      %1377 = vmatprep.mubr.bf16.mxu0 0
      %1378 = vmatmul.mubr.bf16.gmra.mrb[0].mxu0 %v1319
      %v1379 = vpop.f32.mrb[0].mxu0
      %v1380 = vadd.f32 0.0, %v1379
      %v1381 = vpop.f32.mrb[0].mxu0
      %v1382 = vpop.f32.mrb[0].mxu0
      %v1383 = vadd.f32 0.0, %v1382
      %v1384 = vpop.f32.mrb[0].mxu0
      %1385 = vmatprep.mubr.bf16.mxu0 0
      %1386 = vmatmul.mubr.bf16.gmra.mrb[0].mxu0 %v1322
      %v1387 = vpop.f32.mrb[0].mxu0
      %v1388 = vadd.f32 0.0, %v1387
      %v1389 = vpop.f32.mrb[0].mxu0
      %v1390 = vpop.f32.mrb[0].mxu0
      %v1391 = vadd.f32 0.0, %v1390
      %v1392 = vpop.f32.mrb[0].mxu0
      %1393 = vmatprep.mubr.bf16.mxu0 0
      %1394 = vmatmul.mubr.bf16.gmra.mrb[0].mxu0 %v1325
      %v1395 = vpop.f32.mrb[0].mxu0
      %v1396 = vadd.f32 0.0, %v1395
      %v1397 = vpop.f32.mrb[0].mxu0
      %v1398 = vpop.f32.mrb[0].mxu0
      %v1399 = vadd.f32 0.0, %v1398
      %v1400 = vpop.f32.mrb[0].mxu0
      %1401 = vmatprep.mubr.bf16.mxu0 0
      %1402 = vmatmul.mubr.bf16.gmra.mrb[0].mxu0 %v1328
      %v1403 = vpop.f32.mrb[0].mxu0
      %v1404 = vadd.f32 0.0, %v1403
      %v1405 = vpop.f32.mrb[0].mxu0
      %v1406 = vpop.f32.mrb[0].mxu0
      %v1407 = vadd.f32 0.0, %v1406
      %v1408 = vpop.f32.mrb[0].mxu0
      %1409 = vmatprep.mubr.bf16.mxu0 0
      %1410 = vmatmul.mubr.bf16.gmra.mrb[0].mxu0 %v1331
      %v1411 = vpop.f32.mrb[0].mxu0
      %v1412 = vadd.f32 0.0, %v1411
      %v1413 = vpop.f32.mrb[0].mxu0
      %v1414 = vpop.f32.mrb[0].mxu0
      %v1415 = vadd.f32 0.0, %v1414
      %v1416 = vpop.f32.mrb[0].mxu0
      %1417 = vmatprep.mubr.bf16.mxu0 0
      %1418 = vmatmul.mubr.bf16.gmra.mrb[0].mxu0 %v1334
      %v1419 = vpop.f32.mrb[0].mxu0
      %v1420 = vadd.f32 0.0, %v1419
      %v1421 = vpop.f32.mrb[0].mxu0
      %v1422 = vpop.f32.mrb[0].mxu0
      %v1423 = vadd.f32 0.0, %v1422
      %v1424 = vpop.f32.mrb[0].mxu0
      %1425 = vmatprep.mubr.bf16.mxu0 0
      %1426 = vmatmul.mubr.bf16.gmra.mrb[0].mxu0 %v1337
      %v1427 = vpop.f32.mrb[0].mxu0
      %v1428 = vadd.f32 0.0, %v1427
      %v1429 = vpop.f32.mrb[0].mxu0
      %v1430 = vpop.f32.mrb[0].mxu0
      %v1431 = vadd.f32 0.0, %v1430
      %v1432 = vpop.f32.mrb[0].mxu0
      %1433 = vmatprep.mubr.bf16.mxu0 0
      %1434 = vmatmul.mubr.bf16.gmra.mrb[0].mxu0 %v1340
      %v1435 = vpop.f32.mrb[0].mxu0
      %v1436 = vadd.f32 0.0, %v1435
      %v1437 = vpop.f32.mrb[0].mxu0
      %v1438 = vpop.f32.mrb[0].mxu0
      %v1439 = vadd.f32 0.0, %v1438
      %v1440 = vpop.f32.mrb[0].mxu0
      %1441 = vdwg.mxu0
      %v1442 = vadd.f32 %v1104, %v1380
      %v1443 = vadd.f32 %v1105, %v1383
      %v1444 = vadd.f32 %v1106, %v1388
      %v1445 = vadd.f32 %v1107, %v1391
      %v1446 = vadd.f32 %v1108, %v1396
      %v1447 = vadd.f32 %v1109, %v1399
      %v1448 = vadd.f32 %v1110, %v1404
      %v1449 = vadd.f32 %v1111, %v1407
      %v1450 = vadd.f32 %v1112, %v1412
      %v1451 = vadd.f32 %v1113, %v1415
      %v1452 = vadd.f32 %v1114, %v1420
      %v1453 = vadd.f32 %v1115, %v1423
      %v1454 = vadd.f32 %v1116, %v1428
      %v1455 = vadd.f32 %v1117, %v1431
      %v1456 = vadd.f32 %v1118, %v1436
      %v1457 = vadd.f32 %v1119, %v1439
      %s1458 = scalar_lea.vmem %s251, 14
      %v1459 = vld [vmem:[%s1458] sm:$0x3]
      %v1460 = vshrl.u32 %v1307, 16
      %v1462 = vshll.u32 %v1307, 16
      %v1464 = vrot.slane %v1462, 1
      %v1465 = vor.u32 %v1460, %v1464
      %v1466 = vshll.u32 %v1308, 16
      %v1468 = vrot.slane %v1466, 1
      %v1469 = vsel %vm733, %v1465, %v1468
      %v1470 = vshrl.u32 %v1308, 16
      %v1472 = vor.u32 %v1470, %v1468
      %v1473 = vshll.u32 %v1309, 16
      %v1475 = vrot.slane %v1473, 1
      %v1476 = vsel %vm733, %v1472, %v1475
      %v1477 = vshrl.u32 %v1309, 16
      %v1479 = vor.u32 %v1477, %v1475
      %v1480 = vshll.u32 %v1310, 16
      %v1482 = vrot.slane %v1480, 1
      %v1483 = vsel %vm733, %v1479, %v1482
      %v1484 = vshrl.u32 %v1310, 16
      %v1486 = vor.u32 %v1484, %v1482
      %v1487 = vshll.u32 %v1311, 16
      %v1489 = vrot.slane %v1487, 1
      %v1490 = vsel %vm733, %v1486, %v1489
      %v1491 = vshrl.u32 %v1311, 16
      %v1493 = vor.u32 %v1491, %v1489
      %v1494 = vshll.u32 %v1312, 16
      %v1496 = vrot.slane %v1494, 1
      %v1497 = vsel %vm733, %v1493, %v1496
      %v1498 = vshrl.u32 %v1312, 16
      %v1500 = vor.u32 %v1498, %v1496
      %v1501 = vshll.u32 %v1313, 16
      %v1503 = vrot.slane %v1501, 1
      %v1504 = vsel %vm733, %v1500, %v1503
      %v1505 = vshrl.u32 %v1313, 16
      %v1507 = vor.u32 %v1505, %v1503
      %v1508 = vshll.u32 %v1314, 16
      %v1510 = vrot.slane %v1508, 1
      %v1511 = vsel %vm733, %v1507, %v1510
      %v1512 = vshrl.u32 %v1314, 16
      %v1514 = vor.u32 %v1512, %v1510
      %v1516 = vshll.u32 %v1315, 16
      %v1518 = vrot.slane %v1516, 1
      %v1519 = vsel %vm733, %v1514, %v1518
      %v1521 = vsel %vm329, %v1469, 0
      %v1524 = vsel %vm329, %v1476, 0
      %v1527 = vsel %vm329, %v1483, 0
      %v1530 = vsel %vm329, %v1490, 0
      %v1533 = vsel %vm329, %v1497, 0
      %v1536 = vsel %vm329, %v1504, 0
      %v1539 = vsel %vm329, %v1511, 0
      %v1542 = vsel %vm329, %v1519, 0
      %v1545 = vsel %vm354, %v1459, 0
      %1547 = vmatprep.subr.bf16.mxu0 0
      %1548 = vmatpush1.bf16.msra.mxu0 %v1545
      %1549 = vmatprep.subr.bf16.mxu0 0
      %1550 = vmatpush1.bf16.msra.mxu0 0
      %1551 = vmatprep.subr.bf16.mxu0 0
      %1552 = vmatpush1.bf16.msra.mxu0 0
      %1553 = vmatprep.subr.bf16.mxu0 0
      %1554 = vmatpush1.bf16.msra.mxu0 0
      %1555 = vmatprep.subr.bf16.mxu0 0
      %1556 = vmatpush1.bf16.msra.mxu0 0
      %1557 = vmatprep.subr.bf16.mxu0 0
      %1558 = vmatpush1.bf16.msra.mxu0 0
      %1559 = vmatprep.subr.bf16.mxu0 0
      %1560 = vmatpush1.bf16.msra.mxu0 0
      %1561 = vmatprep.subr.bf16.mxu0 0
      %1562 = vmatpush1.bf16.msra.mxu0 0
      %1563 = vmatprep.subr.bf16.mxu0 0
      %1564 = vmatpush1.bf16.msra.mxu0 0
      %1565 = vmatprep.subr.bf16.mxu0 0
      %1566 = vmatpush1.bf16.msra.mxu0 0
      %1567 = vmatprep.subr.bf16.mxu0 0
      %1568 = vmatpush1.bf16.msra.mxu0 0
      %1569 = vmatprep.subr.bf16.mxu0 0
      %1570 = vmatpush1.bf16.msra.mxu0 0
      %1571 = vmatprep.subr.bf16.mxu0 0
      %1572 = vmatpush1.bf16.msra.mxu0 0
      %1573 = vmatprep.subr.bf16.mxu0 0
      %1574 = vmatpush1.bf16.msra.mxu0 0
      %1575 = vmatprep.subr.bf16.mxu0 0
      %1576 = vmatpush1.bf16.msra.mxu0 0
      %1577 = vmatprep.subr.bf16.mxu0 0
      %1578 = vmatpush1.bf16.msra.mxu0 0
      %1579 = vmatprep.mubr.bf16.mxu0 0
      %1580 = vmatmul.mubr.bf16.gmra.mrb[0].mxu0 %v1521
      %v1581 = vpop.f32.mrb[0].mxu0
      %v1582 = vadd.f32 0.0, %v1581
      %v1583 = vpop.f32.mrb[0].mxu0
      %v1584 = vpop.f32.mrb[0].mxu0
      %v1585 = vadd.f32 0.0, %v1584
      %v1586 = vpop.f32.mrb[0].mxu0
      %1587 = vmatprep.mubr.bf16.mxu0 0
      %1588 = vmatmul.mubr.bf16.gmra.mrb[0].mxu0 %v1524
      %v1589 = vpop.f32.mrb[0].mxu0
      %v1590 = vadd.f32 0.0, %v1589
      %v1591 = vpop.f32.mrb[0].mxu0
      %v1592 = vpop.f32.mrb[0].mxu0
      %v1593 = vadd.f32 0.0, %v1592
      %v1594 = vpop.f32.mrb[0].mxu0
      %1595 = vmatprep.mubr.bf16.mxu0 0
      %1596 = vmatmul.mubr.bf16.gmra.mrb[0].mxu0 %v1527
      %v1597 = vpop.f32.mrb[0].mxu0
      %v1598 = vadd.f32 0.0, %v1597
      %v1599 = vpop.f32.mrb[0].mxu0
      %v1600 = vpop.f32.mrb[0].mxu0
      %v1601 = vadd.f32 0.0, %v1600
      %v1602 = vpop.f32.mrb[0].mxu0
      %1603 = vmatprep.mubr.bf16.mxu0 0
      %1604 = vmatmul.mubr.bf16.gmra.mrb[0].mxu0 %v1530
      %v1605 = vpop.f32.mrb[0].mxu0
      %v1606 = vadd.f32 0.0, %v1605
      %v1607 = vpop.f32.mrb[0].mxu0
      %v1608 = vpop.f32.mrb[0].mxu0
      %v1609 = vadd.f32 0.0, %v1608
      %v1610 = vpop.f32.mrb[0].mxu0
      %1611 = vmatprep.mubr.bf16.mxu0 0
      %1612 = vmatmul.mubr.bf16.gmra.mrb[0].mxu0 %v1533
      %v1613 = vpop.f32.mrb[0].mxu0
      %v1614 = vadd.f32 0.0, %v1613
      %v1615 = vpop.f32.mrb[0].mxu0
      %v1616 = vpop.f32.mrb[0].mxu0
      %v1617 = vadd.f32 0.0, %v1616
      %v1618 = vpop.f32.mrb[0].mxu0
      %1619 = vmatprep.mubr.bf16.mxu0 0
      %1620 = vmatmul.mubr.bf16.gmra.mrb[0].mxu0 %v1536
      %v1621 = vpop.f32.mrb[0].mxu0
      %v1622 = vadd.f32 0.0, %v1621
      %v1623 = vpop.f32.mrb[0].mxu0
      %v1624 = vpop.f32.mrb[0].mxu0
      %v1625 = vadd.f32 0.0, %v1624
      %v1626 = vpop.f32.mrb[0].mxu0
      %1627 = vmatprep.mubr.bf16.mxu0 0
      %1628 = vmatmul.mubr.bf16.gmra.mrb[0].mxu0 %v1539
      %v1629 = vpop.f32.mrb[0].mxu0
      %v1630 = vadd.f32 0.0, %v1629
      %v1631 = vpop.f32.mrb[0].mxu0
      %v1632 = vpop.f32.mrb[0].mxu0
      %v1633 = vadd.f32 0.0, %v1632
      %v1634 = vpop.f32.mrb[0].mxu0
      %1635 = vmatprep.mubr.bf16.mxu0 0
      %1636 = vmatmul.mubr.bf16.gmra.mrb[0].mxu0 %v1542
      %v1637 = vpop.f32.mrb[0].mxu0
      %v1638 = vadd.f32 0.0, %v1637
      %v1639 = vpop.f32.mrb[0].mxu0
      %v1640 = vpop.f32.mrb[0].mxu0
      %v1641 = vadd.f32 0.0, %v1640
      %v1642 = vpop.f32.mrb[0].mxu0
      %1643 = vdwg.mxu0
      %v1644 = vadd.f32 %v1272, %v1582
      %v1645 = vadd.f32 %v1273, %v1585
      %v1646 = vadd.f32 %v1274, %v1590
      %v1647 = vadd.f32 %v1275, %v1593
      %v1648 = vadd.f32 %v1276, %v1598
      %v1649 = vadd.f32 %v1277, %v1601
      %v1650 = vadd.f32 %v1278, %v1606
      %v1651 = vadd.f32 %v1279, %v1609
      %v1652 = vadd.f32 %v1280, %v1614
      %v1653 = vadd.f32 %v1281, %v1617
      %v1654 = vadd.f32 %v1282, %v1622
      %v1655 = vadd.f32 %v1283, %v1625
      %v1656 = vadd.f32 %v1284, %v1630
      %v1657 = vadd.f32 %v1285, %v1633
      %v1658 = vadd.f32 %v1286, %v1638
      %v1659 = vadd.f32 %v1287, %v1641
      %s1660 = scalar_lea.vmem %s251, 16
      %v1661 = vld [vmem:[%s1660] sm:$0x3]
      %v1671 = vrot.slane %v1307, 1
      %v1672 = vrot.slane %v1308, 1
      %v1673 = vsel %vm311, %v1671, %v1672
      %v1674 = vrot.slane %v1309, 1
      %v1675 = vsel %vm311, %v1672, %v1674
      %v1676 = vrot.slane %v1310, 1
      %v1677 = vsel %vm311, %v1674, %v1676
      %v1678 = vrot.slane %v1311, 1
      %v1679 = vsel %vm311, %v1676, %v1678
      %v1680 = vrot.slane %v1312, 1
      %v1681 = vsel %vm311, %v1678, %v1680
      %v1682 = vrot.slane %v1313, 1
      %v1683 = vsel %vm311, %v1680, %v1682
      %v1684 = vrot.slane %v1314, 1
      %v1685 = vsel %vm311, %v1682, %v1684
      %v1686 = vrot.slane %v1315, 1
      %v1687 = vsel %vm311, %v1684, %v1686
      %v1689 = vsel %vm329, %v1673, 0
      %v1692 = vsel %vm329, %v1675, 0
      %v1695 = vsel %vm329, %v1677, 0
      %v1698 = vsel %vm329, %v1679, 0
      %v1701 = vsel %vm329, %v1681, 0
      %v1704 = vsel %vm329, %v1683, 0
      %v1707 = vsel %vm329, %v1685, 0
      %v1710 = vsel %vm329, %v1687, 0
      %v1713 = vsel %vm354, %v1661, 0
      %1715 = vmatprep.subr.bf16.mxu0 0
      %1716 = vmatpush1.bf16.msra.mxu0 %v1713
      %1717 = vmatprep.subr.bf16.mxu0 0
      %1718 = vmatpush1.bf16.msra.mxu0 0
      %1719 = vmatprep.subr.bf16.mxu0 0
      %1720 = vmatpush1.bf16.msra.mxu0 0
      %1721 = vmatprep.subr.bf16.mxu0 0
      %1722 = vmatpush1.bf16.msra.mxu0 0
      %1723 = vmatprep.subr.bf16.mxu0 0
      %1724 = vmatpush1.bf16.msra.mxu0 0
      %1725 = vmatprep.subr.bf16.mxu0 0
      %1726 = vmatpush1.bf16.msra.mxu0 0
      %1727 = vmatprep.subr.bf16.mxu0 0
      %1728 = vmatpush1.bf16.msra.mxu0 0
      %1729 = vmatprep.subr.bf16.mxu0 0
      %1730 = vmatpush1.bf16.msra.mxu0 0
      %1731 = vmatprep.subr.bf16.mxu0 0
      %1732 = vmatpush1.bf16.msra.mxu0 0
      %1733 = vmatprep.subr.bf16.mxu0 0
      %1734 = vmatpush1.bf16.msra.mxu0 0
      %1735 = vmatprep.subr.bf16.mxu0 0
      %1736 = vmatpush1.bf16.msra.mxu0 0
      %1737 = vmatprep.subr.bf16.mxu0 0
      %1738 = vmatpush1.bf16.msra.mxu0 0
      %1739 = vmatprep.subr.bf16.mxu0 0
      %1740 = vmatpush1.bf16.msra.mxu0 0
      %1741 = vmatprep.subr.bf16.mxu0 0
      %1742 = vmatpush1.bf16.msra.mxu0 0
      %1743 = vmatprep.subr.bf16.mxu0 0
      %1744 = vmatpush1.bf16.msra.mxu0 0
      %1745 = vmatprep.subr.bf16.mxu0 0
      %1746 = vmatpush1.bf16.msra.mxu0 0
      %1747 = vmatprep.mubr.bf16.mxu0 0
      %1748 = vmatmul.mubr.bf16.gmra.mrb[0].mxu0 %v1689
      %v1749 = vpop.f32.mrb[0].mxu0
      %v1750 = vadd.f32 0.0, %v1749
      %v1751 = vpop.f32.mrb[0].mxu0
      %v1752 = vpop.f32.mrb[0].mxu0
      %v1753 = vadd.f32 0.0, %v1752
      %v1754 = vpop.f32.mrb[0].mxu0
      %1755 = vmatprep.mubr.bf16.mxu0 0
      %1756 = vmatmul.mubr.bf16.gmra.mrb[0].mxu0 %v1692
      %v1757 = vpop.f32.mrb[0].mxu0
      %v1758 = vadd.f32 0.0, %v1757
      %v1759 = vpop.f32.mrb[0].mxu0
      %v1760 = vpop.f32.mrb[0].mxu0
      %v1761 = vadd.f32 0.0, %v1760
      %v1762 = vpop.f32.mrb[0].mxu0
      %1763 = vmatprep.mubr.bf16.mxu0 0
      %1764 = vmatmul.mubr.bf16.gmra.mrb[0].mxu0 %v1695
      %v1765 = vpop.f32.mrb[0].mxu0
      %v1766 = vadd.f32 0.0, %v1765
      %v1767 = vpop.f32.mrb[0].mxu0
      %v1768 = vpop.f32.mrb[0].mxu0
      %v1769 = vadd.f32 0.0, %v1768
      %v1770 = vpop.f32.mrb[0].mxu0
      %1771 = vmatprep.mubr.bf16.mxu0 0
      %1772 = vmatmul.mubr.bf16.gmra.mrb[0].mxu0 %v1698
      %v1773 = vpop.f32.mrb[0].mxu0
      %v1774 = vadd.f32 0.0, %v1773
      %v1775 = vpop.f32.mrb[0].mxu0
      %v1776 = vpop.f32.mrb[0].mxu0
      %v1777 = vadd.f32 0.0, %v1776
      %v1778 = vpop.f32.mrb[0].mxu0
      %1779 = vmatprep.mubr.bf16.mxu0 0
      %1780 = vmatmul.mubr.bf16.gmra.mrb[0].mxu0 %v1701
      %v1781 = vpop.f32.mrb[0].mxu0
      %v1782 = vadd.f32 0.0, %v1781
      %v1783 = vpop.f32.mrb[0].mxu0
      %v1784 = vpop.f32.mrb[0].mxu0
      %v1785 = vadd.f32 0.0, %v1784
      %v1786 = vpop.f32.mrb[0].mxu0
      %1787 = vmatprep.mubr.bf16.mxu0 0
      %1788 = vmatmul.mubr.bf16.gmra.mrb[0].mxu0 %v1704
      %v1789 = vpop.f32.mrb[0].mxu0
      %v1790 = vadd.f32 0.0, %v1789
      %v1791 = vpop.f32.mrb[0].mxu0
      %v1792 = vpop.f32.mrb[0].mxu0
      %v1793 = vadd.f32 0.0, %v1792
      %v1794 = vpop.f32.mrb[0].mxu0
      %1795 = vmatprep.mubr.bf16.mxu0 0
      %1796 = vmatmul.mubr.bf16.gmra.mrb[0].mxu0 %v1707
      %v1797 = vpop.f32.mrb[0].mxu0
      %v1798 = vadd.f32 0.0, %v1797
      %v1799 = vpop.f32.mrb[0].mxu0
      %v1800 = vpop.f32.mrb[0].mxu0
      %v1801 = vadd.f32 0.0, %v1800
      %v1802 = vpop.f32.mrb[0].mxu0
      %1803 = vmatprep.mubr.bf16.mxu0 0
      %1804 = vmatmul.mubr.bf16.gmra.mrb[0].mxu0 %v1710
      %v1805 = vpop.f32.mrb[0].mxu0
      %v1806 = vadd.f32 0.0, %v1805
      %v1807 = vpop.f32.mrb[0].mxu0
      %v1808 = vpop.f32.mrb[0].mxu0
      %v1809 = vadd.f32 0.0, %v1808
      %v1810 = vpop.f32.mrb[0].mxu0
      %1811 = vdwg.mxu0
      %v1812 = vadd.f32 %v1442, %v1750
      %v1813 = vadd.f32 %v1443, %v1753
      %v1814 = vadd.f32 %v1444, %v1758
      %v1815 = vadd.f32 %v1445, %v1761
      %v1816 = vadd.f32 %v1446, %v1766
      %v1817 = vadd.f32 %v1447, %v1769
      %v1818 = vadd.f32 %v1448, %v1774
      %v1819 = vadd.f32 %v1449, %v1777
      %v1820 = vadd.f32 %v1450, %v1782
      %v1821 = vadd.f32 %v1451, %v1785
      %v1822 = vadd.f32 %v1452, %v1790
      %v1823 = vadd.f32 %v1453, %v1793
      %v1824 = vadd.f32 %v1454, %v1798
      %v1825 = vadd.f32 %v1455, %v1801
      %v1826 = vadd.f32 %v1456, %v1806
      %v1827 = vadd.f32 %v1457, %v1809
      %v1828 = vadd.f32 %v1812, %v1644
      %v1829 = vadd.f32 %v1813, %v1645
      %v1830 = vadd.f32 %v1814, %v1646
      %v1831 = vadd.f32 %v1815, %v1647
      %v1832 = vadd.f32 %v1816, %v1648
      %v1833 = vadd.f32 %v1817, %v1649
      %v1834 = vadd.f32 %v1818, %v1650
      %v1835 = vadd.f32 %v1819, %v1651
      %v1836 = vadd.f32 %v1820, %v1652
      %v1837 = vadd.f32 %v1821, %v1653
      %v1838 = vadd.f32 %v1822, %v1654
      %v1839 = vadd.f32 %v1823, %v1655
      %v1840 = vadd.f32 %v1824, %v1656
      %v1841 = vadd.f32 %v1825, %v1657
      %v1842 = vadd.f32 %v1826, %v1658
      %v1843 = vadd.f32 %v1827, %v1659
      %v1844 = vld [vmem:[%s254] sm:$0x1]
      %v1846 = vlaneseq
      %v1847 = vshrl.u32 %v1846, 7
      %v1848 = vsub.s32 0, %v1847
      %v1849 = vrot.slane %v1844, %v1848
      %v1851 = vadd.f32 %v1828, %v1849
      %v1852 = vadd.f32 %v1829, %v1849
      %v1853 = vadd.f32 %v1830, %v1849
      %v1854 = vadd.f32 %v1831, %v1849
      %v1855 = vadd.f32 %v1832, %v1849
      %v1856 = vadd.f32 %v1833, %v1849
      %v1857 = vadd.f32 %v1834, %v1849
      %v1858 = vadd.f32 %v1835, %v1849
      %v1859 = vadd.f32 %v1836, %v1849
      %v1860 = vadd.f32 %v1837, %v1849
      %v1861 = vadd.f32 %v1838, %v1849
      %v1862 = vadd.f32 %v1839, %v1849
      %v1863 = vadd.f32 %v1840, %v1849
      %v1864 = vadd.f32 %v1841, %v1849
      %v1865 = vadd.f32 %v1842, %v1849
      %v1866 = vadd.f32 %v1843, %v1849
      %s1867 = sld [smem:[#allocation2]]
      %vm1868 = vcmp.ge.f32.partialorder %v1851, 0.0
      %vm1869 = vcmp.ge.f32.partialorder %v1852, 0.0
      %vm1870 = vcmp.ge.f32.partialorder %v1853, 0.0
      %vm1871 = vcmp.ge.f32.partialorder %v1854, 0.0
      %vm1872 = vcmp.ge.f32.partialorder %v1855, 0.0
      %vm1873 = vcmp.ge.f32.partialorder %v1856, 0.0
      %vm1874 = vcmp.ge.f32.partialorder %v1857, 0.0
      %vm1875 = vcmp.ge.f32.partialorder %v1858, 0.0
      %vm1876 = vcmp.ge.f32.partialorder %v1859, 0.0
      %vm1877 = vcmp.ge.f32.partialorder %v1860, 0.0
      %vm1878 = vcmp.ge.f32.partialorder %v1861, 0.0
      %vm1879 = vcmp.ge.f32.partialorder %v1862, 0.0
      %vm1880 = vcmp.ge.f32.partialorder %v1863, 0.0
      %vm1881 = vcmp.ge.f32.partialorder %v1864, 0.0
      %vm1882 = vcmp.ge.f32.partialorder %v1865, 0.0
      %vm1883 = vcmp.ge.f32.partialorder %v1866, 0.0
      %v1884 = vstv %s1867
      %v1885 = vmul.f32 %v1884, %v1851
      %v1886 = vmul.f32 %v1884, %v1852
      %v1887 = vmul.f32 %v1884, %v1853
      %v1888 = vmul.f32 %v1884, %v1854
      %v1889 = vmul.f32 %v1884, %v1855
      %v1890 = vmul.f32 %v1884, %v1856
      %v1891 = vmul.f32 %v1884, %v1857
      %v1892 = vmul.f32 %v1884, %v1858
      %v1893 = vmul.f32 %v1884, %v1859
      %v1894 = vmul.f32 %v1884, %v1860
      %v1895 = vmul.f32 %v1884, %v1861
      %v1896 = vmul.f32 %v1884, %v1862
      %v1897 = vmul.f32 %v1884, %v1863
      %v1898 = vmul.f32 %v1884, %v1864
      %v1899 = vmul.f32 %v1884, %v1865
      %v1900 = vmul.f32 %v1884, %v1866
      %v1901 = vsel %vm1868, %v1851, %v1885
      %v1902 = vsel %vm1869, %v1852, %v1886
      %v1903 = vsel %vm1870, %v1853, %v1887
      %v1904 = vsel %vm1871, %v1854, %v1888
      %v1905 = vsel %vm1872, %v1855, %v1889
      %v1906 = vsel %vm1873, %v1856, %v1890
      %v1907 = vsel %vm1874, %v1857, %v1891
      %v1908 = vsel %vm1875, %v1858, %v1892
      %v1909 = vsel %vm1876, %v1859, %v1893
      %v1910 = vsel %vm1877, %v1860, %v1894
      %v1911 = vsel %vm1878, %v1861, %v1895
      %v1912 = vsel %vm1879, %v1862, %v1896
      %v1913 = vsel %vm1880, %v1863, %v1897
      %v1914 = vsel %vm1881, %v1864, %v1898
      %v1915 = vsel %vm1882, %v1865, %v1899
      %v1916 = vsel %vm1883, %v1866, %v1900
      %v1917 = vpack.c.bf16 %v1902, %v1901
      %v1918 = vpack.c.bf16 %v1904, %v1903
      %v1919 = vpack.c.bf16 %v1906, %v1905
      %v1920 = vpack.c.bf16 %v1908, %v1907
      %v1921 = vpack.c.bf16 %v1910, %v1909
      %v1922 = vpack.c.bf16 %v1912, %v1911
      %v1923 = vpack.c.bf16 %v1914, %v1913
      %v1924 = vpack.c.bf16 %v1916, %v1915
      %v1933 = vunpack.c.l.b16 %v1917
      %v1934 = vunpack.c.h.b16 %v1917
      %v1935 = vunpack.c.l.b16 %v1918
      %v1936 = vunpack.c.h.b16 %v1918
      %v1937 = vunpack.c.l.b16 %v1919
      %v1938 = vunpack.c.h.b16 %v1919
      %v1939 = vunpack.c.l.b16 %v1920
      %v1940 = vunpack.c.h.b16 %v1920
      %v1941 = vunpack.c.l.b16 %v1921
      %v1942 = vunpack.c.h.b16 %v1921
      %v1943 = vunpack.c.l.b16 %v1922
      %v1944 = vunpack.c.h.b16 %v1922
      %v1945 = vunpack.c.l.b16 %v1923
      %v1946 = vunpack.c.h.b16 %v1923
      %v1947 = vunpack.c.l.b16 %v1924
      %v1948 = vunpack.c.h.b16 %v1924
      %v1949 = vpack.c.b16 %v1933, %v1933
      %v1950 = vpack.c.b16 %v1934, %v1934
      %v1951 = vpack.c.b16 %v1935, %v1935
      %v1952 = vpack.c.b16 %v1936, %v1936
      %v1953 = vpack.c.b16 %v1937, %v1937
      %v1954 = vpack.c.b16 %v1938, %v1938
      %v1955 = vpack.c.b16 %v1939, %v1939
      %v1956 = vpack.c.b16 %v1940, %v1940
      %v1957 = vpack.c.b16 %v1941, %v1941
      %v1958 = vpack.c.b16 %v1942, %v1942
      %v1959 = vpack.c.b16 %v1943, %v1943
      %v1960 = vpack.c.b16 %v1944, %v1944
      %v1961 = vpack.c.b16 %v1945, %v1945
      %v1962 = vpack.c.b16 %v1946, %v1946
      %v1963 = vpack.c.b16 %v1947, %v1947
      %v1964 = vpack.c.b16 %v1948, %v1948
      %1981 = vst [vmem:[%s266] sm:$0xf] %v1949
      %1982 = vst [vmem:[%s266 + $0x4] sm:$0xf] %v1950
      %1983 = vst [vmem:[%s266 + $0x8] sm:$0xf] %v1951
      %1984 = vst [vmem:[%s266 + $0xc] sm:$0xf] %v1952
      %1985 = vst [vmem:[%s266 + $0x10] sm:$0xf] %v1953
      %1986 = vst [vmem:[%s266 + $0x14] sm:$0xf] %v1954
      %1987 = vst [vmem:[%s266 + $0x18] sm:$0xf] %v1955
      %1988 = vst [vmem:[%s266 + $0x1c] sm:$0xf] %v1956
      %1989 = vst [vmem:[%s266 + $0x20] sm:$0xf] %v1957
      %1990 = vst [vmem:[%s266 + $0x24] sm:$0xf] %v1958
      %1991 = vst [vmem:[%s266 + $0x28] sm:$0xf] %v1959
      %1992 = vst [vmem:[%s266 + $0x2c] sm:$0xf] %v1960
      %1993 = vst [vmem:[%s266 + $0x30] sm:$0xf] %v1961
      %1994 = vst [vmem:[%s266 + $0x34] sm:$0xf] %v1962
      %1995 = vst [vmem:[%s266 + $0x38] sm:$0xf] %v1963
      %1996 = vst [vmem:[%s266 + $0x3c] sm:$0xf] %v1964
      %s1997 = smul.u32 16, %s23
      %p1998 = scmp.lt.s32.totalorder %s21, 1
      %s1999 = scalar_select %p1998, %s21, 1
      %p2000 = scmp.lt.s32.totalorder %s1997, 47
      %s2001 = scalar_select %p2000, %s1997, 47
      %p2002 = scmp.lt.s32.totalorder %s22, 0
      %s2003 = scalar_select %p2002, %s22, 0
      %s2004 = sadd.s32 %s2003, %s2001
      %s2005 = smul.addr %s1999, 48
      %s2006 = sadd.s32 %s2004, %s2005
      %s2007 = smul.addr %s2006, 4
      %s2008 = scalar_lea.vmem %s4, %s2007
      // Predicated region
      $region37: #{upsample_block_forward.1} parent=35 // pred_check
        %p2009 = pneg %p156
      $region38: #{upsample_block_forward.1} parent=35 // pred_check_branch
        %2011 = sbr.rel (%p2009) target = $region40
      $region39: #{upsample_block_forward.1} parent=35 // pred_region
        %s2012 = smul.u32 16, %s23
      $region40: #{upsample_block_forward.1} parent=35 // pred_fallthru
        _
    $region36: #{upsample_block_forward.1} parent=5 // pred_fallthru
      _
    %p2013 = scmp.le.s32.totalorder 2, %s11
    // Predicated region
    $region41: #{upsample_block_forward.1} parent=5 // pred_check
      %p2014 = pneg %p2013
    $region42: #{upsample_block_forward.1} parent=5 // pred_check_branch
      %2016 = sbr.rel (%p2014) target = $region44
    $region43: #{upsample_block_forward.1} parent=5 // pred_region
      %s2017 = ssub.s32 %s11, 2
      // Predicated region
      $region45: #{upsample_block_forward.1} parent=43 // pred_check
        %p2018 = pneg %p162
      $region46: #{upsample_block_forward.1} parent=43 // pred_check_branch
        %2020 = sbr.rel (%p2018) target = $region48
      $region47: #{upsample_block_forward.1} parent=43 // pred_region
        %s2021 = smul.u32 16, %s26
        %p2022 = scmp.lt.s32.totalorder %s24, 1
        %s2023 = scalar_select %p2022, %s24, 1
        %p2024 = scmp.lt.s32.totalorder %s2021, 47
        %s2025 = scalar_select %p2024, %s2021, 47
        %p2026 = scmp.lt.s32.totalorder %s25, 0
        %s2027 = scalar_select %p2026, %s25, 0
        %s2028 = sadd.s32 %s2027, %s2025
        %s2029 = smul.addr %s2023, 48
        %s2030 = sadd.s32 %s2028, %s2029
        %s2031 = smul.addr %s2030, 4
        %s2032 = scalar_lea.vmem %s4, %s2031
      $region48: #{upsample_block_forward.1} parent=43 // pred_fallthru
        _
    $region44: #{upsample_block_forward.1} parent=5 // pred_fallthru
      _
  $region6: #{upsample_block_forward.1} parent=0 // loop_footer
    %s15 = sadd.s32 1, %s11
  $region7: #{upsample_block_forward.1} parent=0 // loop_footer_branch
    %10 = sbr.rel target = $region3
  $region8: #{upsample_block_forward.1} parent=0 // loop_exit
    _

</llo_original>
